<compile_context>
chip_gen: v7x
topology: tpu7x:2x2x1
jax: 0.10.0
libtpu: 0.0.40
codegen_flags: <defaults>
</compile_context>

<pallas_src>
import functools

import jax
import jax.numpy as jnp
from jax.experimental import pallas as pl
from jax.experimental.pallas import tpu as pltpu


def _dense_block_kernel(*refs, nb_layers, in_planes, growth, H, W, nb):
    HW = H * W
    pad = W + 1                               # one zero row + one guard element
    c_total = in_planes + nb_layers * growth

    x_ref = refs[0]                           # (nb, in_planes, H*W)  f32
    o_ref = refs[1 + 3 * nb_layers]           # (nb, c_total,  H*W)  f32 slab
    act_ref = refs[2 + 3 * nb_layers]         # (c_total, H*W + 2*(W+1)) bf16

    # Column-validity masks (lane masks shared by all layers / images).
    xc = jax.lax.broadcasted_iota(jnp.int32, (1, HW), 1) % W
    left_ok = (xc != 0).astype(jnp.float32)       # valid output cols for dx=-1
    right_ok = (xc != W - 1).astype(jnp.float32)  # valid output cols for dx=+1

    # Zero the row/guard pads of the activation scratch (~1 KiB; the interior
    # is fully rewritten every layer, so only the pads need zeroing).
    act_ref[:, 0:pad] = jnp.zeros((c_total, pad), jnp.bfloat16)
    act_ref[:, pad + HW:] = jnp.zeros((c_total, pad), jnp.bfloat16)

    for i in range(nb):                       # images in this grid step
        # Seed the channel-major feature slab with the input channels.
        o_ref[i, 0:in_planes, :] = x_ref[i]

        for l in range(nb_layers):            # static unroll (c_in varies)
            c_in = in_planes + l * growth
            s_ref = refs[1 + 3 * l]           # (c_in, 1) folded-BN scale, f32
            b_ref = refs[2 + 3 * l]           # (c_in, 1) folded-BN shift, f32
            w_ref = refs[3 + 3 * l]           # (growth, 9*c_in) bf16 taps

            # BN (eval, folded) + ReLU in f32; ONE cast to bf16 at the store.
            a = jnp.maximum(o_ref[i, 0:c_in, :] * s_ref[...] + b_ref[...], 0.0)
            act_ref[0:c_in, pad:pad + HW] = a.astype(jnp.bfloat16)

            # 3x3 conv = 9 accumulated MXU matmuls on lane-dense (c_in, H*W)
            # shifted views; zero pad rows handle row overflow, lane masks
            # handle column wrap-around.
            acc = jnp.zeros((growth, HW), jnp.float32)
            for dx in (-1, 0, 1):
                part = jnp.zeros((growth, HW), jnp.float32)
                for dy in (-1, 0, 1):
                    t = (dy + 1) * 3 + (dx + 1)
                    w_tap = w_ref[:, t * c_in:(t + 1) * c_in]   # (growth, c_in)
                    off = pad + dy * W + dx
                    a_shift = act_ref[0:c_in, off:off + HW]     # (c_in, H*W)
                    part = part + jnp.dot(
                        w_tap, a_shift, preferred_element_type=jnp.float32)
                if dx == -1:
                    part = part * left_ok
                elif dx == 1:
                    part = part * right_ok
                acc = acc + part

            # DenseNet concat: append this layer's channels to the slab.
            o_ref[i, c_in:c_in + growth, :] = acc


def dense_block_pallas(x_nchw, params, *, images_per_step=1):
    """x_nchw: (N, in_planes, H, W) like PyTorch.  Returns (N, C_total, H, W)."""
    N, in_planes, H, W = x_nchw.shape
    nb_layers = len(params)
    growth = params[0]["w_col"].shape[0]
    c_total = in_planes + nb_layers * growth
    HW = H * W
    nb = images_per_step
    assert N % nb == 0, "N must be divisible by images_per_step"

    # Trailing-dim reshape only (no transpose, no extra HBM round trip).
    x_flat = x_nchw.reshape(N, in_planes, HW).astype(jnp.float32)

    in_specs = [pl.BlockSpec((nb, in_planes, HW), lambda n: (n, 0, 0))]
    args = [x_flat]
    for p in params:
        in_specs.append(pl.BlockSpec(p["scale"].shape, lambda n: (0, 0)))
        in_specs.append(pl.BlockSpec(p["shift"].shape, lambda n: (0, 0)))
        in_specs.append(pl.BlockSpec(p["w_col"].shape, lambda n: (0, 0)))
        args += [p["scale"], p["shift"], p["w_col"]]

    kernel = functools.partial(
        _dense_block_kernel, nb_layers=nb_layers, in_planes=in_planes,
        growth=growth, H=H, W=W, nb=nb)

    out_flat = pl.pallas_call(
        kernel,
        out_shape=jax.ShapeDtypeStruct((N, c_total, HW), jnp.float32),
        grid=(N // nb,),
        in_specs=in_specs,
        out_specs=pl.BlockSpec((nb, c_total, HW), lambda n: (n, 0, 0)),
        scratch_shapes=[
            # row-padded, guard-padded bf16 activation scratch (lane-dense)
            pltpu.VMEM((c_total, HW + 2 * (W + 1)), jnp.bfloat16),
        ],
        compiler_params=pltpu.CompilerParams(
            dimension_semantics=("parallel",),
            # Safe on all generations for these block sizes; raise toward
            # ~96 MiB on v5e/v6e (<= ~48 MiB on v7x) when images_per_step grows.
            vmem_limit_bytes=32 * 1024 * 1024),
    )(*args)

    # Trailing-dim reshape only (free) - output is already channel-major NCHW.
    return out_flat.reshape(N, c_total, H, W)


def make_dense_block_params(key, nb_layers, in_planes, growth_rate):
    """Deterministic parameter init for each BasicBlock (eval-mode BN folded)."""
    params = []
    eps = 1e-5
    for i in range(nb_layers):
        cin = in_planes + i * growth_rate
        cout = growth_rate
        key, k_w, k_g, k_b, k_m, k_v = jax.random.split(key, 6)
        std = (2.0 / (9 * cout)) ** 0.5
        w_oihw = jax.random.normal(k_w, (cout, cin, 3, 3), jnp.float32) * std
        gamma = 0.5 + jax.random.uniform(k_g, (cin,), jnp.float32)
        beta = 0.1 * jax.random.normal(k_b, (cin,), jnp.float32)
        running_mean = 0.1 * jax.random.normal(k_m, (cin,), jnp.float32)
        running_var = 0.5 + jax.random.uniform(k_v, (cin,), jnp.float32)
        # Fold BN (eval mode) into per-channel scale/shift, shaped (cin, 1) to
        # lane-broadcast over the flattened spatial axis.
        scale = gamma / jnp.sqrt(running_var + eps)
        shift = beta - running_mean * scale
        # Weight in transposed im2col layout: (Cout,Cin,3,3) -> (g, ky, kx, c)
        # -> (growth, 9*cin) bf16, column index = (ky*3 + kx)*cin + c, so both
        # MXU operands and the (growth, H*W) result are lane-dense.
        w_col = jnp.transpose(w_oihw, (0, 2, 3, 1)).reshape(cout, 9 * cin)
        params.append(dict(
            w_oihw=w_oihw, gamma=gamma, beta=beta,
            running_mean=running_mean, running_var=running_var,
            scale=scale.reshape(cin, 1),
            shift=shift.reshape(cin, 1),
            w_col=w_col.astype(jnp.bfloat16),
        ))
    return params


def dense_block_reference(x_nchw, params):
    """Pure-JAX reference (lax conv, f32 HIGHEST) matching eval-mode semantics."""
    eps = 1e-5
    x = jnp.transpose(x_nchw, (0, 2, 3, 1)).astype(jnp.float32)
    for p in params:
        a = (x - p["running_mean"]) / jnp.sqrt(p["running_var"] + eps)
        a = jnp.maximum(a * p["gamma"] + p["beta"], 0.0)
        w_hwio = jnp.transpose(p["w_oihw"], (2, 3, 1, 0))
        out = jax.lax.conv_general_dilated(
            a, w_hwio, window_strides=(1, 1), padding="SAME",
            dimension_numbers=("NHWC", "HWIO", "NHWC"),
            precision=jax.lax.Precision.HIGHEST)
        x = jnp.concatenate([x, out], axis=-1)
    return jnp.transpose(x, (0, 3, 1, 2))


if __name__ == "__main__":
    # TODO(synk): training-mode dropout (dropRate>0) not implemented; the
    # default dropRate=0.0 makes it a no-op.
    nb_layers, in_planes, growth_rate = 3, 4, 4
    N, H, W = 2, 16, 16

    key = jax.random.PRNGKey(0)
    key, kx = jax.random.split(key)
    x = jax.random.normal(kx, (N, in_planes, H, W), jnp.float32)  # NCHW

    params = make_dense_block_params(key, nb_layers, in_planes, growth_rate)

    # images_per_step=1 keeps grid=(2,) so both v7x TensorCores get work.
    y = jax.block_until_ready(dense_block_pallas(x, params, images_per_step=1))
    y_ref = dense_block_reference(x, params)

    assert y.shape == (N, in_planes + nb_layers * growth_rate, H, W), y.shape
    # MXU operands are bf16 (f32 accumulation / f32 slab) vs. an f32 HIGHEST
    # reference, so tolerances are relaxed accordingly.
    max_err = float(jnp.max(jnp.abs(y - y_ref)))
    assert jnp.allclose(y, y_ref, rtol=1e-1, atol=5e-2), max_err

    print("KERNEL_OK")
</pallas_src>

<mosaic_0001>
module attributes {stable_mosaic.version = 11 : i64} {
  func.func @_dense_block_kernel(%arg0: i32, %arg1: memref<1x4x256xf32, #tpu.memory_space<vmem>>, %arg2: memref<4x1xf32, #tpu.memory_space<vmem>>, %arg3: memref<4x1xf32, #tpu.memory_space<vmem>>, %arg4: memref<4x36xbf16, #tpu.memory_space<vmem>>, %arg5: memref<8x1xf32, #tpu.memory_space<vmem>>, %arg6: memref<8x1xf32, #tpu.memory_space<vmem>>, %arg7: memref<4x72xbf16, #tpu.memory_space<vmem>>, %arg8: memref<12x1xf32, #tpu.memory_space<vmem>>, %arg9: memref<12x1xf32, #tpu.memory_space<vmem>>, %arg10: memref<4x108xbf16, #tpu.memory_space<vmem>>, %arg11: memref<1x16x256xf32, #tpu.memory_space<vmem>>, %arg12: memref<16x290xbf16, #tpu.memory_space<vmem>>) attributes {dimension_semantics = [#tpu.dimension_semantics<parallel>], iteration_bounds = array<i64: 2>, scalar_prefetch = 0 : i64, scratch_operands = 1 : i64, tpu.core_type = #tpu.core_type<tc>, window_params = [{transform_indices = @transform_0, window_bounds = array<i64: 1, 4, 256>}, {pipeline_mode = #tpu.pipeline_mode<synchronous>, transform_indices = @transform_1, window_bounds = array<i64: 4, 1>}, {pipeline_mode = #tpu.pipeline_mode<synchronous>, transform_indices = @transform_2, window_bounds = array<i64: 4, 1>}, {pipeline_mode = #tpu.pipeline_mode<synchronous>, transform_indices = @transform_3, window_bounds = array<i64: 4, 36>}, {pipeline_mode = #tpu.pipeline_mode<synchronous>, transform_indices = @transform_4, window_bounds = array<i64: 8, 1>}, {pipeline_mode = #tpu.pipeline_mode<synchronous>, transform_indices = @transform_5, window_bounds = array<i64: 8, 1>}, {pipeline_mode = #tpu.pipeline_mode<synchronous>, transform_indices = @transform_6, window_bounds = array<i64: 4, 72>}, {pipeline_mode = #tpu.pipeline_mode<synchronous>, transform_indices = @transform_7, window_bounds = array<i64: 12, 1>}, {pipeline_mode = #tpu.pipeline_mode<synchronous>, transform_indices = @transform_8, window_bounds = array<i64: 12, 1>}, {pipeline_mode = #tpu.pipeline_mode<synchronous>, transform_indices = @transform_9, window_bounds = array<i64: 4, 108>}, {transform_indices = @transform_10, window_bounds = array<i64: 1, 16, 256>}]} {
    %0 = tpu.iota {dimensions = array<i32: 1>} : vector<1x256xi32>
    %c16_i32 = arith.constant 16 : i32
    %c0_i32 = arith.constant 0 : i32
    %1 = arith.cmpi eq, %c16_i32, %c0_i32 : i32
    %c1_i32 = arith.constant 1 : i32
    %2 = arith.select %1, %c1_i32, %c16_i32 : i32
    %3 = vector.broadcast %2 : i32 to vector<1x256xi32>
    %4 = arith.remsi %0, %3 : vector<1x256xi32>
    %c0_i32_0 = arith.constant 0 : i32
    %5 = vector.broadcast %c0_i32_0 : i32 to vector<1x256xi32>
    %6 = arith.cmpi ne, %4, %5 : vector<1x256xi32>
    %c0_i32_1 = arith.constant 0 : i32
    %7 = vector.broadcast %c0_i32_1 : i32 to vector<1x256xi32>
    %8 = arith.cmpi slt, %4, %7 : vector<1x256xi32>
    %c0_i32_2 = arith.constant 0 : i32
    %9 = arith.cmpi slt, %2, %c0_i32_2 : i32
    %10 = vector.broadcast %9 : i1 to vector<1x256xi1>
    %11 = vector.broadcast %10 : vector<1x256xi1> to vector<1x256xi1>
    %12 = arith.xori %8, %11 : vector<1x256xi1>
    %13 = arith.andi %12, %6 : vector<1x256xi1>
    %14 = vector.broadcast %2 : i32 to vector<1x256xi32>
    %15 = arith.addi %4, %14 : vector<1x256xi32>
    %16 = arith.select %13, %15, %4 : vector<1x256xi1>, vector<1x256xi32>
    %c0_i32_3 = arith.constant 0 : i32
    %17 = vector.broadcast %c0_i32_3 : i32 to vector<1x256xi32>
    %18 = arith.cmpi ne, %16, %17 : vector<1x256xi32>
    %19 = arith.extui %18 : vector<1x256xi1> to vector<1x256xi32>
    %20 = arith.sitofp %19 : vector<1x256xi32> to vector<1x256xf32>
    %c15_i32 = arith.constant 15 : i32
    %21 = vector.broadcast %c15_i32 : i32 to vector<1x256xi32>
    %22 = arith.cmpi ne, %16, %21 : vector<1x256xi32>
    %23 = arith.extui %22 : vector<1x256xi1> to vector<1x256xi32>
    %24 = arith.sitofp %23 : vector<1x256xi32> to vector<1x256xf32>
    %cst = arith.constant 0.000000e+00 : bf16
    %25 = vector.broadcast %cst : bf16 to vector<16x17xbf16>
    %c0 = arith.constant 0 : index
    %c0_4 = arith.constant 0 : index
    %26 = vector.load %arg12[%c0, %c0_4] : memref<16x290xbf16, #tpu.memory_space<vmem>>, vector<16x17xbf16>
    tpu.vector_store %arg12[%c0, %c0_4], %25 {strides = array<i32>} : memref<16x290xbf16, #tpu.memory_space<vmem>>, vector<16x17xbf16>,
    %cst_5 = arith.constant 0.000000e+00 : bf16
    %27 = vector.broadcast %cst_5 : bf16 to vector<16x17xbf16>
    %c0_6 = arith.constant 0 : index
    %c273 = arith.constant 273 : index
    %28 = vector.load %arg12[%c0_6, %c273] : memref<16x290xbf16, #tpu.memory_space<vmem>>, vector<16x17xbf16>
    tpu.vector_store %arg12[%c0_6, %c273], %27 {strides = array<i32>} : memref<16x290xbf16, #tpu.memory_space<vmem>>, vector<16x17xbf16>,
    %c0_7 = arith.constant 0 : index
    %c0_8 = arith.constant 0 : index
    %c0_9 = arith.constant 0 : index
    %29 = vector.load %arg1[%c0_7, %c0_8, %c0_9] : memref<1x4x256xf32, #tpu.memory_space<vmem>>, vector<1x4x256xf32>
    %30 = vector.shape_cast %29 : vector<1x4x256xf32> to vector<4x256xf32>
    %c0_10 = arith.constant 0 : index
    %c0_11 = arith.constant 0 : index
    %c0_12 = arith.constant 0 : index
    %31 = vector.load %arg11[%c0_10, %c0_11, %c0_12] : memref<1x16x256xf32, #tpu.memory_space<vmem>>, vector<1x4x256xf32>
    %32 = vector.shape_cast %31 : vector<1x4x256xf32> to vector<4x256xf32>
    %33 = vector.shape_cast %30 : vector<4x256xf32> to vector<1x4x256xf32>
    tpu.vector_store %arg11[%c0_10, %c0_11, %c0_12], %33 {strides = array<i32>} : memref<1x16x256xf32, #tpu.memory_space<vmem>>, vector<1x4x256xf32>,
    %c0_13 = arith.constant 0 : index
    %c0_14 = arith.constant 0 : index
    %c0_15 = arith.constant 0 : index
    %34 = vector.load %arg11[%c0_13, %c0_14, %c0_15] : memref<1x16x256xf32, #tpu.memory_space<vmem>>, vector<1x4x256xf32>
    %35 = vector.shape_cast %34 : vector<1x4x256xf32> to vector<4x256xf32>
    %c0_16 = arith.constant 0 : index
    %c0_17 = arith.constant 0 : index
    %36 = vector.load %arg2[%c0_16, %c0_17] : memref<4x1xf32, #tpu.memory_space<vmem>>, vector<4x1xf32>
    %37 = vector.broadcast %36 : vector<4x1xf32> to vector<4x256xf32>
    %38 = arith.mulf %35, %37 : vector<4x256xf32>
    %c0_18 = arith.constant 0 : index
    %c0_19 = arith.constant 0 : index
    %39 = vector.load %arg3[%c0_18, %c0_19] : memref<4x1xf32, #tpu.memory_space<vmem>>, vector<4x1xf32>
    %40 = vector.broadcast %39 : vector<4x1xf32> to vector<4x256xf32>
    %41 = arith.addf %38, %40 : vector<4x256xf32>
    %cst_20 = arith.constant 0.000000e+00 : f32
    %42 = vector.broadcast %cst_20 : f32 to vector<4x256xf32>
    %43 = arith.maximumf %41, %42 : vector<4x256xf32>
    %44 = arith.truncf %43 : vector<4x256xf32> to vector<4x256xbf16>
    %c0_21 = arith.constant 0 : index
    %c17 = arith.constant 17 : index
    %45 = vector.load %arg12[%c0_21, %c17] : memref<16x290xbf16, #tpu.memory_space<vmem>>, vector<4x256xbf16>
    tpu.vector_store %arg12[%c0_21, %c17], %44 {strides = array<i32>} : memref<16x290xbf16, #tpu.memory_space<vmem>>, vector<4x256xbf16>,
    %cst_22 = arith.constant 0.000000e+00 : f32
    %46 = vector.broadcast %cst_22 : f32 to vector<4x256xf32>
    %cst_23 = arith.constant 0.000000e+00 : f32
    %47 = vector.broadcast %cst_23 : f32 to vector<4x256xf32>
    %c0_24 = arith.constant 0 : index
    %c0_25 = arith.constant 0 : index
    %48 = vector.load %arg4[%c0_24, %c0_25] : memref<4x36xbf16, #tpu.memory_space<vmem>>, vector<4x4xbf16>
    %c0_26 = arith.constant 0 : index
    %c0_27 = arith.constant 0 : index
    %49 = vector.load %arg12[%c0_26, %c0_27] : memref<16x290xbf16, #tpu.memory_space<vmem>>, vector<4x256xbf16>
    %cst_28 = arith.constant dense<0.000000e+00> : vector<4x256xf32>
    %50 = tpu.matmul %48, %49, %cst_28 {dimension_numbers = #tpu.dot_dimension_numbers<[1], [0], [0], [1], [0, 0, 1, 1], [], []>} : vector<4x4xbf16>, vector<4x256xbf16>, vector<4x256xf32> -> vector<4x256xf32>
    %51 = arith.addf %47, %50 : vector<4x256xf32>
    %c0_29 = arith.constant 0 : index
    %c12 = arith.constant 12 : index
    %52 = vector.load %arg4[%c0_29, %c12] : memref<4x36xbf16, #tpu.memory_space<vmem>>, vector<4x4xbf16>
    %c0_30 = arith.constant 0 : index
    %c16 = arith.constant 16 : index
    %53 = vector.load %arg12[%c0_30, %c16] : memref<16x290xbf16, #tpu.memory_space<vmem>>, vector<4x256xbf16>
    %cst_31 = arith.constant dense<0.000000e+00> : vector<4x256xf32>
    %54 = tpu.matmul %52, %53, %cst_31 {dimension_numbers = #tpu.dot_dimension_numbers<[1], [0], [0], [1], [0, 0, 1, 1], [], []>} : vector<4x4xbf16>, vector<4x256xbf16>, vector<4x256xf32> -> vector<4x256xf32>
    %55 = arith.addf %51, %54 : vector<4x256xf32>
    %c0_32 = arith.constant 0 : index
    %c24 = arith.constant 24 : index
    %56 = vector.load %arg4[%c0_32, %c24] : memref<4x36xbf16, #tpu.memory_space<vmem>>, vector<4x4xbf16>
    %c0_33 = arith.constant 0 : index
    %c32 = arith.constant 32 : index
    %57 = vector.load %arg12[%c0_33, %c32] : memref<16x290xbf16, #tpu.memory_space<vmem>>, vector<4x256xbf16>
    %cst_34 = arith.constant dense<0.000000e+00> : vector<4x256xf32>
    %58 = tpu.matmul %56, %57, %cst_34 {dimension_numbers = #tpu.dot_dimension_numbers<[1], [0], [0], [1], [0, 0, 1, 1], [], []>} : vector<4x4xbf16>, vector<4x256xbf16>, vector<4x256xf32> -> vector<4x256xf32>
    %59 = arith.addf %55, %58 : vector<4x256xf32>
    %60 = vector.broadcast %20 : vector<1x256xf32> to vector<4x256xf32>
    %61 = arith.mulf %59, %60 : vector<4x256xf32>
    %62 = arith.addf %46, %61 : vector<4x256xf32>
    %cst_35 = arith.constant 0.000000e+00 : f32
    %63 = vector.broadcast %cst_35 : f32 to vector<4x256xf32>
    %c0_36 = arith.constant 0 : index
    %c4 = arith.constant 4 : index
    %64 = vector.load %arg4[%c0_36, %c4] : memref<4x36xbf16, #tpu.memory_space<vmem>>, vector<4x4xbf16>
    %c0_37 = arith.constant 0 : index
    %c1 = arith.constant 1 : index
    %65 = vector.load %arg12[%c0_37, %c1] : memref<16x290xbf16, #tpu.memory_space<vmem>>, vector<4x256xbf16>
    %cst_38 = arith.constant dense<0.000000e+00> : vector<4x256xf32>
    %66 = tpu.matmul %64, %65, %cst_38 {dimension_numbers = #tpu.dot_dimension_numbers<[1], [0], [0], [1], [0, 0, 1, 1], [], []>} : vector<4x4xbf16>, vector<4x256xbf16>, vector<4x256xf32> -> vector<4x256xf32>
    %67 = arith.addf %63, %66 : vector<4x256xf32>
    %c0_39 = arith.constant 0 : index
    %c16_40 = arith.constant 16 : index
    %68 = vector.load %arg4[%c0_39, %c16_40] : memref<4x36xbf16, #tpu.memory_space<vmem>>, vector<4x4xbf16>
    %c0_41 = arith.constant 0 : index
    %c17_42 = arith.constant 17 : index
    %69 = vector.load %arg12[%c0_41, %c17_42] : memref<16x290xbf16, #tpu.memory_space<vmem>>, vector<4x256xbf16>
    %cst_43 = arith.constant dense<0.000000e+00> : vector<4x256xf32>
    %70 = tpu.matmul %68, %69, %cst_43 {dimension_numbers = #tpu.dot_dimension_numbers<[1], [0], [0], [1], [0, 0, 1, 1], [], []>} : vector<4x4xbf16>, vector<4x256xbf16>, vector<4x256xf32> -> vector<4x256xf32>
    %71 = arith.addf %67, %70 : vector<4x256xf32>
    %c0_44 = arith.constant 0 : index
    %c28 = arith.constant 28 : index
    %72 = vector.load %arg4[%c0_44, %c28] : memref<4x36xbf16, #tpu.memory_space<vmem>>, vector<4x4xbf16>
    %c0_45 = arith.constant 0 : index
    %c33 = arith.constant 33 : index
    %73 = vector.load %arg12[%c0_45, %c33] : memref<16x290xbf16, #tpu.memory_space<vmem>>, vector<4x256xbf16>
    %cst_46 = arith.constant dense<0.000000e+00> : vector<4x256xf32>
    %74 = tpu.matmul %72, %73, %cst_46 {dimension_numbers = #tpu.dot_dimension_numbers<[1], [0], [0], [1], [0, 0, 1, 1], [], []>} : vector<4x4xbf16>, vector<4x256xbf16>, vector<4x256xf32> -> vector<4x256xf32>
    %75 = arith.addf %71, %74 : vector<4x256xf32>
    %76 = arith.addf %62, %75 : vector<4x256xf32>
    %cst_47 = arith.constant 0.000000e+00 : f32
    %77 = vector.broadcast %cst_47 : f32 to vector<4x256xf32>
    %c0_48 = arith.constant 0 : index
    %c8 = arith.constant 8 : index
    %78 = vector.load %arg4[%c0_48, %c8] : memref<4x36xbf16, #tpu.memory_space<vmem>>, vector<4x4xbf16>
    %c0_49 = arith.constant 0 : index
    %c2 = arith.constant 2 : index
    %79 = vector.load %arg12[%c0_49, %c2] : memref<16x290xbf16, #tpu.memory_space<vmem>>, vector<4x256xbf16>
    %cst_50 = arith.constant dense<0.000000e+00> : vector<4x256xf32>
    %80 = tpu.matmul %78, %79, %cst_50 {dimension_numbers = #tpu.dot_dimension_numbers<[1], [0], [0], [1], [0, 0, 1, 1], [], []>} : vector<4x4xbf16>, vector<4x256xbf16>, vector<4x256xf32> -> vector<4x256xf32>
    %81 = arith.addf %77, %80 : vector<4x256xf32>
    %c0_51 = arith.constant 0 : index
    %c20 = arith.constant 20 : index
    %82 = vector.load %arg4[%c0_51, %c20] : memref<4x36xbf16, #tpu.memory_space<vmem>>, vector<4x4xbf16>
    %c0_52 = arith.constant 0 : index
    %c18 = arith.constant 18 : index
    %83 = vector.load %arg12[%c0_52, %c18] : memref<16x290xbf16, #tpu.memory_space<vmem>>, vector<4x256xbf16>
    %cst_53 = arith.constant dense<0.000000e+00> : vector<4x256xf32>
    %84 = tpu.matmul %82, %83, %cst_53 {dimension_numbers = #tpu.dot_dimension_numbers<[1], [0], [0], [1], [0, 0, 1, 1], [], []>} : vector<4x4xbf16>, vector<4x256xbf16>, vector<4x256xf32> -> vector<4x256xf32>
    %85 = arith.addf %81, %84 : vector<4x256xf32>
    %c0_54 = arith.constant 0 : index
    %c32_55 = arith.constant 32 : index
    %86 = vector.load %arg4[%c0_54, %c32_55] : memref<4x36xbf16, #tpu.memory_space<vmem>>, vector<4x4xbf16>
    %c0_56 = arith.constant 0 : index
    %c34 = arith.constant 34 : index
    %87 = vector.load %arg12[%c0_56, %c34] : memref<16x290xbf16, #tpu.memory_space<vmem>>, vector<4x256xbf16>
    %cst_57 = arith.constant dense<0.000000e+00> : vector<4x256xf32>
    %88 = tpu.matmul %86, %87, %cst_57 {dimension_numbers = #tpu.dot_dimension_numbers<[1], [0], [0], [1], [0, 0, 1, 1], [], []>} : vector<4x4xbf16>, vector<4x256xbf16>, vector<4x256xf32> -> vector<4x256xf32>
    %89 = arith.addf %85, %88 : vector<4x256xf32>
    %90 = vector.broadcast %24 : vector<1x256xf32> to vector<4x256xf32>
    %91 = arith.mulf %89, %90 : vector<4x256xf32>
    %92 = arith.addf %76, %91 : vector<4x256xf32>
    %c0_58 = arith.constant 0 : index
    %c4_59 = arith.constant 4 : index
    %c0_60 = arith.constant 0 : index
    %93 = vector.load %arg11[%c0_58, %c4_59, %c0_60] : memref<1x16x256xf32, #tpu.memory_space<vmem>>, vector<1x4x256xf32>
    %94 = vector.shape_cast %93 : vector<1x4x256xf32> to vector<4x256xf32>
    %95 = vector.shape_cast %92 : vector<4x256xf32> to vector<1x4x256xf32>
    tpu.vector_store %arg11[%c0_58, %c4_59, %c0_60], %95 {strides = array<i32>} : memref<1x16x256xf32, #tpu.memory_space<vmem>>, vector<1x4x256xf32>,
    %c0_61 = arith.constant 0 : index
    %c0_62 = arith.constant 0 : index
    %c0_63 = arith.constant 0 : index
    %96 = vector.load %arg11[%c0_61, %c0_62, %c0_63] : memref<1x16x256xf32, #tpu.memory_space<vmem>>, vector<1x8x256xf32>
    %97 = vector.shape_cast %96 : vector<1x8x256xf32> to vector<8x256xf32>
    %c0_64 = arith.constant 0 : index
    %c0_65 = arith.constant 0 : index
    %98 = vector.load %arg5[%c0_64, %c0_65] : memref<8x1xf32, #tpu.memory_space<vmem>>, vector<8x1xf32>
    %99 = vector.broadcast %98 : vector<8x1xf32> to vector<8x256xf32>
    %100 = arith.mulf %97, %99 : vector<8x256xf32>
    %c0_66 = arith.constant 0 : index
    %c0_67 = arith.constant 0 : index
    %101 = vector.load %arg6[%c0_66, %c0_67] : memref<8x1xf32, #tpu.memory_space<vmem>>, vector<8x1xf32>
    %102 = vector.broadcast %101 : vector<8x1xf32> to vector<8x256xf32>
    %103 = arith.addf %100, %102 : vector<8x256xf32>
    %cst_68 = arith.constant 0.000000e+00 : f32
    %104 = vector.broadcast %cst_68 : f32 to vector<8x256xf32>
    %105 = arith.maximumf %103, %104 : vector<8x256xf32>
    %106 = arith.truncf %105 : vector<8x256xf32> to vector<8x256xbf16>
    %c0_69 = arith.constant 0 : index
    %c17_70 = arith.constant 17 : index
    %107 = vector.load %arg12[%c0_69, %c17_70] : memref<16x290xbf16, #tpu.memory_space<vmem>>, vector<8x256xbf16>
    tpu.vector_store %arg12[%c0_69, %c17_70], %106 {strides = array<i32>} : memref<16x290xbf16, #tpu.memory_space<vmem>>, vector<8x256xbf16>,
    %cst_71 = arith.constant 0.000000e+00 : f32
    %108 = vector.broadcast %cst_71 : f32 to vector<4x256xf32>
    %cst_72 = arith.constant 0.000000e+00 : f32
    %109 = vector.broadcast %cst_72 : f32 to vector<4x256xf32>
    %c0_73 = arith.constant 0 : index
    %c0_74 = arith.constant 0 : index
    %110 = vector.load %arg7[%c0_73, %c0_74] : memref<4x72xbf16, #tpu.memory_space<vmem>>, vector<4x8xbf16>
    %c0_75 = arith.constant 0 : index
    %c0_76 = arith.constant 0 : index
    %111 = vector.load %arg12[%c0_75, %c0_76] : memref<16x290xbf16, #tpu.memory_space<vmem>>, vector<8x256xbf16>
    %cst_77 = arith.constant dense<0.000000e+00> : vector<4x256xf32>
    %112 = tpu.matmul %110, %111, %cst_77 {dimension_numbers = #tpu.dot_dimension_numbers<[1], [0], [0], [1], [0, 0, 1, 1], [], []>} : vector<4x8xbf16>, vector<8x256xbf16>, vector<4x256xf32> -> vector<4x256xf32>
    %113 = arith.addf %109, %112 : vector<4x256xf32>
    %c0_78 = arith.constant 0 : index
    %c24_79 = arith.constant 24 : index
    %114 = vector.load %arg7[%c0_78, %c24_79] : memref<4x72xbf16, #tpu.memory_space<vmem>>, vector<4x8xbf16>
    %c0_80 = arith.constant 0 : index
    %c16_81 = arith.constant 16 : index
    %115 = vector.load %arg12[%c0_80, %c16_81] : memref<16x290xbf16, #tpu.memory_space<vmem>>, vector<8x256xbf16>
    %cst_82 = arith.constant dense<0.000000e+00> : vector<4x256xf32>
    %116 = tpu.matmul %114, %115, %cst_82 {dimension_numbers = #tpu.dot_dimension_numbers<[1], [0], [0], [1], [0, 0, 1, 1], [], []>} : vector<4x8xbf16>, vector<8x256xbf16>, vector<4x256xf32> -> vector<4x256xf32>
    %117 = arith.addf %113, %116 : vector<4x256xf32>
    %c0_83 = arith.constant 0 : index
    %c48 = arith.constant 48 : index
    %118 = vector.load %arg7[%c0_83, %c48] : memref<4x72xbf16, #tpu.memory_space<vmem>>, vector<4x8xbf16>
    %c0_84 = arith.constant 0 : index
    %c32_85 = arith.constant 32 : index
    %119 = vector.load %arg12[%c0_84, %c32_85] : memref<16x290xbf16, #tpu.memory_space<vmem>>, vector<8x256xbf16>
    %cst_86 = arith.constant dense<0.000000e+00> : vector<4x256xf32>
    %120 = tpu.matmul %118, %119, %cst_86 {dimension_numbers = #tpu.dot_dimension_numbers<[1], [0], [0], [1], [0, 0, 1, 1], [], []>} : vector<4x8xbf16>, vector<8x256xbf16>, vector<4x256xf32> -> vector<4x256xf32>
    %121 = arith.addf %117, %120 : vector<4x256xf32>
    %122 = vector.broadcast %20 : vector<1x256xf32> to vector<4x256xf32>
    %123 = arith.mulf %121, %122 : vector<4x256xf32>
    %124 = arith.addf %108, %123 : vector<4x256xf32>
    %cst_87 = arith.constant 0.000000e+00 : f32
    %125 = vector.broadcast %cst_87 : f32 to vector<4x256xf32>
    %c0_88 = arith.constant 0 : index
    %c8_89 = arith.constant 8 : index
    %126 = vector.load %arg7[%c0_88, %c8_89] : memref<4x72xbf16, #tpu.memory_space<vmem>>, vector<4x8xbf16>
    %c0_90 = arith.constant 0 : index
    %c1_91 = arith.constant 1 : index
    %127 = vector.load %arg12[%c0_90, %c1_91] : memref<16x290xbf16, #tpu.memory_space<vmem>>, vector<8x256xbf16>
    %cst_92 = arith.constant dense<0.000000e+00> : vector<4x256xf32>
    %128 = tpu.matmul %126, %127, %cst_92 {dimension_numbers = #tpu.dot_dimension_numbers<[1], [0], [0], [1], [0, 0, 1, 1], [], []>} : vector<4x8xbf16>, vector<8x256xbf16>, vector<4x256xf32> -> vector<4x256xf32>
    %129 = arith.addf %125, %128 : vector<4x256xf32>
    %c0_93 = arith.constant 0 : index
    %c32_94 = arith.constant 32 : index
    %130 = vector.load %arg7[%c0_93, %c32_94] : memref<4x72xbf16, #tpu.memory_space<vmem>>, vector<4x8xbf16>
    %c0_95 = arith.constant 0 : index
    %c17_96 = arith.constant 17 : index
    %131 = vector.load %arg12[%c0_95, %c17_96] : memref<16x290xbf16, #tpu.memory_space<vmem>>, vector<8x256xbf16>
    %cst_97 = arith.constant dense<0.000000e+00> : vector<4x256xf32>
    %132 = tpu.matmul %130, %131, %cst_97 {dimension_numbers = #tpu.dot_dimension_numbers<[1], [0], [0], [1], [0, 0, 1, 1], [], []>} : vector<4x8xbf16>, vector<8x256xbf16>, vector<4x256xf32> -> vector<4x256xf32>
    %133 = arith.addf %129, %132 : vector<4x256xf32>
    %c0_98 = arith.constant 0 : index
    %c56 = arith.constant 56 : index
    %134 = vector.load %arg7[%c0_98, %c56] : memref<4x72xbf16, #tpu.memory_space<vmem>>, vector<4x8xbf16>
    %c0_99 = arith.constant 0 : index
    %c33_100 = arith.constant 33 : index
    %135 = vector.load %arg12[%c0_99, %c33_100] : memref<16x290xbf16, #tpu.memory_space<vmem>>, vector<8x256xbf16>
    %cst_101 = arith.constant dense<0.000000e+00> : vector<4x256xf32>
    %136 = tpu.matmul %134, %135, %cst_101 {dimension_numbers = #tpu.dot_dimension_numbers<[1], [0], [0], [1], [0, 0, 1, 1], [], []>} : vector<4x8xbf16>, vector<8x256xbf16>, vector<4x256xf32> -> vector<4x256xf32>
    %137 = arith.addf %133, %136 : vector<4x256xf32>
    %138 = arith.addf %124, %137 : vector<4x256xf32>
    %cst_102 = arith.constant 0.000000e+00 : f32
    %139 = vector.broadcast %cst_102 : f32 to vector<4x256xf32>
    %c0_103 = arith.constant 0 : index
    %c16_104 = arith.constant 16 : index
    %140 = vector.load %arg7[%c0_103, %c16_104] : memref<4x72xbf16, #tpu.memory_space<vmem>>, vector<4x8xbf16>
    %c0_105 = arith.constant 0 : index
    %c2_106 = arith.constant 2 : index
    %141 = vector.load %arg12[%c0_105, %c2_106] : memref<16x290xbf16, #tpu.memory_space<vmem>>, vector<8x256xbf16>
    %cst_107 = arith.constant dense<0.000000e+00> : vector<4x256xf32>
    %142 = tpu.matmul %140, %141, %cst_107 {dimension_numbers = #tpu.dot_dimension_numbers<[1], [0], [0], [1], [0, 0, 1, 1], [], []>} : vector<4x8xbf16>, vector<8x256xbf16>, vector<4x256xf32> -> vector<4x256xf32>
    %143 = arith.addf %139, %142 : vector<4x256xf32>
    %c0_108 = arith.constant 0 : index
    %c40 = arith.constant 40 : index
    %144 = vector.load %arg7[%c0_108, %c40] : memref<4x72xbf16, #tpu.memory_space<vmem>>, vector<4x8xbf16>
    %c0_109 = arith.constant 0 : index
    %c18_110 = arith.constant 18 : index
    %145 = vector.load %arg12[%c0_109, %c18_110] : memref<16x290xbf16, #tpu.memory_space<vmem>>, vector<8x256xbf16>
    %cst_111 = arith.constant dense<0.000000e+00> : vector<4x256xf32>
    %146 = tpu.matmul %144, %145, %cst_111 {dimension_numbers = #tpu.dot_dimension_numbers<[1], [0], [0], [1], [0, 0, 1, 1], [], []>} : vector<4x8xbf16>, vector<8x256xbf16>, vector<4x256xf32> -> vector<4x256xf32>
    %147 = arith.addf %143, %146 : vector<4x256xf32>
    %c0_112 = arith.constant 0 : index
    %c64 = arith.constant 64 : index
    %148 = vector.load %arg7[%c0_112, %c64] : memref<4x72xbf16, #tpu.memory_space<vmem>>, vector<4x8xbf16>
    %c0_113 = arith.constant 0 : index
    %c34_114 = arith.constant 34 : index
    %149 = vector.load %arg12[%c0_113, %c34_114] : memref<16x290xbf16, #tpu.memory_space<vmem>>, vector<8x256xbf16>
    %cst_115 = arith.constant dense<0.000000e+00> : vector<4x256xf32>
    %150 = tpu.matmul %148, %149, %cst_115 {dimension_numbers = #tpu.dot_dimension_numbers<[1], [0], [0], [1], [0, 0, 1, 1], [], []>} : vector<4x8xbf16>, vector<8x256xbf16>, vector<4x256xf32> -> vector<4x256xf32>
    %151 = arith.addf %147, %150 : vector<4x256xf32>
    %152 = vector.broadcast %24 : vector<1x256xf32> to vector<4x256xf32>
    %153 = arith.mulf %151, %152 : vector<4x256xf32>
    %154 = arith.addf %138, %153 : vector<4x256xf32>
    %c0_116 = arith.constant 0 : index
    %c8_117 = arith.constant 8 : index
    %c0_118 = arith.constant 0 : index
    %155 = vector.load %arg11[%c0_116, %c8_117, %c0_118] : memref<1x16x256xf32, #tpu.memory_space<vmem>>, vector<1x4x256xf32>
    %156 = vector.shape_cast %155 : vector<1x4x256xf32> to vector<4x256xf32>
    %157 = vector.shape_cast %154 : vector<4x256xf32> to vector<1x4x256xf32>
    tpu.vector_store %arg11[%c0_116, %c8_117, %c0_118], %157 {strides = array<i32>} : memref<1x16x256xf32, #tpu.memory_space<vmem>>, vector<1x4x256xf32>,
    %c0_119 = arith.constant 0 : index
    %c0_120 = arith.constant 0 : index
    %c0_121 = arith.constant 0 : index
    %158 = vector.load %arg11[%c0_119, %c0_120, %c0_121] : memref<1x16x256xf32, #tpu.memory_space<vmem>>, vector<1x12x256xf32>
    %159 = vector.shape_cast %158 : vector<1x12x256xf32> to vector<12x256xf32>
    %c0_122 = arith.constant 0 : index
    %c0_123 = arith.constant 0 : index
    %160 = vector.load %arg8[%c0_122, %c0_123] : memref<12x1xf32, #tpu.memory_space<vmem>>, vector<12x1xf32>
    %161 = vector.broadcast %160 : vector<12x1xf32> to vector<12x256xf32>
    %162 = arith.mulf %159, %161 : vector<12x256xf32>
    %c0_124 = arith.constant 0 : index
    %c0_125 = arith.constant 0 : index
    %163 = vector.load %arg9[%c0_124, %c0_125] : memref<12x1xf32, #tpu.memory_space<vmem>>, vector<12x1xf32>
    %164 = vector.broadcast %163 : vector<12x1xf32> to vector<12x256xf32>
    %165 = arith.addf %162, %164 : vector<12x256xf32>
    %cst_126 = arith.constant 0.000000e+00 : f32
    %166 = vector.broadcast %cst_126 : f32 to vector<12x256xf32>
    %167 = arith.maximumf %165, %166 : vector<12x256xf32>
    %168 = arith.truncf %167 : vector<12x256xf32> to vector<12x256xbf16>
    %c0_127 = arith.constant 0 : index
    %c17_128 = arith.constant 17 : index
    %169 = vector.load %arg12[%c0_127, %c17_128] : memref<16x290xbf16, #tpu.memory_space<vmem>>, vector<12x256xbf16>
    tpu.vector_store %arg12[%c0_127, %c17_128], %168 {strides = array<i32>} : memref<16x290xbf16, #tpu.memory_space<vmem>>, vector<12x256xbf16>,
    %cst_129 = arith.constant 0.000000e+00 : f32
    %170 = vector.broadcast %cst_129 : f32 to vector<4x256xf32>
    %cst_130 = arith.constant 0.000000e+00 : f32
    %171 = vector.broadcast %cst_130 : f32 to vector<4x256xf32>
    %c0_131 = arith.constant 0 : index
    %c0_132 = arith.constant 0 : index
    %172 = vector.load %arg10[%c0_131, %c0_132] : memref<4x108xbf16, #tpu.memory_space<vmem>>, vector<4x12xbf16>
    %c0_133 = arith.constant 0 : index
    %c0_134 = arith.constant 0 : index
    %173 = vector.load %arg12[%c0_133, %c0_134] : memref<16x290xbf16, #tpu.memory_space<vmem>>, vector<12x256xbf16>
    %cst_135 = arith.constant dense<0.000000e+00> : vector<4x256xf32>
    %174 = tpu.matmul %172, %173, %cst_135 {dimension_numbers = #tpu.dot_dimension_numbers<[1], [0], [0], [1], [0, 0, 1, 1], [], []>} : vector<4x12xbf16>, vector<12x256xbf16>, vector<4x256xf32> -> vector<4x256xf32>
    %175 = arith.addf %171, %174 : vector<4x256xf32>
    %c0_136 = arith.constant 0 : index
    %c36 = arith.constant 36 : index
    %176 = vector.load %arg10[%c0_136, %c36] : memref<4x108xbf16, #tpu.memory_space<vmem>>, vector<4x12xbf16>
    %c0_137 = arith.constant 0 : index
    %c16_138 = arith.constant 16 : index
    %177 = vector.load %arg12[%c0_137, %c16_138] : memref<16x290xbf16, #tpu.memory_space<vmem>>, vector<12x256xbf16>
    %cst_139 = arith.constant dense<0.000000e+00> : vector<4x256xf32>
    %178 = tpu.matmul %176, %177, %cst_139 {dimension_numbers = #tpu.dot_dimension_numbers<[1], [0], [0], [1], [0, 0, 1, 1], [], []>} : vector<4x12xbf16>, vector<12x256xbf16>, vector<4x256xf32> -> vector<4x256xf32>
    %179 = arith.addf %175, %178 : vector<4x256xf32>
    %c0_140 = arith.constant 0 : index
    %c72 = arith.constant 72 : index
    %180 = vector.load %arg10[%c0_140, %c72] : memref<4x108xbf16, #tpu.memory_space<vmem>>, vector<4x12xbf16>
    %c0_141 = arith.constant 0 : index
    %c32_142 = arith.constant 32 : index
    %181 = vector.load %arg12[%c0_141, %c32_142] : memref<16x290xbf16, #tpu.memory_space<vmem>>, vector<12x256xbf16>
    %cst_143 = arith.constant dense<0.000000e+00> : vector<4x256xf32>
    %182 = tpu.matmul %180, %181, %cst_143 {dimension_numbers = #tpu.dot_dimension_numbers<[1], [0], [0], [1], [0, 0, 1, 1], [], []>} : vector<4x12xbf16>, vector<12x256xbf16>, vector<4x256xf32> -> vector<4x256xf32>
    %183 = arith.addf %179, %182 : vector<4x256xf32>
    %184 = vector.broadcast %20 : vector<1x256xf32> to vector<4x256xf32>
    %185 = arith.mulf %183, %184 : vector<4x256xf32>
    %186 = arith.addf %170, %185 : vector<4x256xf32>
    %cst_144 = arith.constant 0.000000e+00 : f32
    %187 = vector.broadcast %cst_144 : f32 to vector<4x256xf32>
    %c0_145 = arith.constant 0 : index
    %c12_146 = arith.constant 12 : index
    %188 = vector.load %arg10[%c0_145, %c12_146] : memref<4x108xbf16, #tpu.memory_space<vmem>>, vector<4x12xbf16>
    %c0_147 = arith.constant 0 : index
    %c1_148 = arith.constant 1 : index
    %189 = vector.load %arg12[%c0_147, %c1_148] : memref<16x290xbf16, #tpu.memory_space<vmem>>, vector<12x256xbf16>
    %cst_149 = arith.constant dense<0.000000e+00> : vector<4x256xf32>
    %190 = tpu.matmul %188, %189, %cst_149 {dimension_numbers = #tpu.dot_dimension_numbers<[1], [0], [0], [1], [0, 0, 1, 1], [], []>} : vector<4x12xbf16>, vector<12x256xbf16>, vector<4x256xf32> -> vector<4x256xf32>
    %191 = arith.addf %187, %190 : vector<4x256xf32>
    %c0_150 = arith.constant 0 : index
    %c48_151 = arith.constant 48 : index
    %192 = vector.load %arg10[%c0_150, %c48_151] : memref<4x108xbf16, #tpu.memory_space<vmem>>, vector<4x12xbf16>
    %c0_152 = arith.constant 0 : index
    %c17_153 = arith.constant 17 : index
    %193 = vector.load %arg12[%c0_152, %c17_153] : memref<16x290xbf16, #tpu.memory_space<vmem>>, vector<12x256xbf16>
    %cst_154 = arith.constant dense<0.000000e+00> : vector<4x256xf32>
    %194 = tpu.matmul %192, %193, %cst_154 {dimension_numbers = #tpu.dot_dimension_numbers<[1], [0], [0], [1], [0, 0, 1, 1], [], []>} : vector<4x12xbf16>, vector<12x256xbf16>, vector<4x256xf32> -> vector<4x256xf32>
    %195 = arith.addf %191, %194 : vector<4x256xf32>
    %c0_155 = arith.constant 0 : index
    %c84 = arith.constant 84 : index
    %196 = vector.load %arg10[%c0_155, %c84] : memref<4x108xbf16, #tpu.memory_space<vmem>>, vector<4x12xbf16>
    %c0_156 = arith.constant 0 : index
    %c33_157 = arith.constant 33 : index
    %197 = vector.load %arg12[%c0_156, %c33_157] : memref<16x290xbf16, #tpu.memory_space<vmem>>, vector<12x256xbf16>
    %cst_158 = arith.constant dense<0.000000e+00> : vector<4x256xf32>
    %198 = tpu.matmul %196, %197, %cst_158 {dimension_numbers = #tpu.dot_dimension_numbers<[1], [0], [0], [1], [0, 0, 1, 1], [], []>} : vector<4x12xbf16>, vector<12x256xbf16>, vector<4x256xf32> -> vector<4x256xf32>
    %199 = arith.addf %195, %198 : vector<4x256xf32>
    %200 = arith.addf %186, %199 : vector<4x256xf32>
    %cst_159 = arith.constant 0.000000e+00 : f32
    %201 = vector.broadcast %cst_159 : f32 to vector<4x256xf32>
    %c0_160 = arith.constant 0 : index
    %c24_161 = arith.constant 24 : index
    %202 = vector.load %arg10[%c0_160, %c24_161] : memref<4x108xbf16, #tpu.memory_space<vmem>>, vector<4x12xbf16>
    %c0_162 = arith.constant 0 : index
    %c2_163 = arith.constant 2 : index
    %203 = vector.load %arg12[%c0_162, %c2_163] : memref<16x290xbf16, #tpu.memory_space<vmem>>, vector<12x256xbf16>
    %cst_164 = arith.constant dense<0.000000e+00> : vector<4x256xf32>
    %204 = tpu.matmul %202, %203, %cst_164 {dimension_numbers = #tpu.dot_dimension_numbers<[1], [0], [0], [1], [0, 0, 1, 1], [], []>} : vector<4x12xbf16>, vector<12x256xbf16>, vector<4x256xf32> -> vector<4x256xf32>
    %205 = arith.addf %201, %204 : vector<4x256xf32>
    %c0_165 = arith.constant 0 : index
    %c60 = arith.constant 60 : index
    %206 = vector.load %arg10[%c0_165, %c60] : memref<4x108xbf16, #tpu.memory_space<vmem>>, vector<4x12xbf16>
    %c0_166 = arith.constant 0 : index
    %c18_167 = arith.constant 18 : index
    %207 = vector.load %arg12[%c0_166, %c18_167] : memref<16x290xbf16, #tpu.memory_space<vmem>>, vector<12x256xbf16>
    %cst_168 = arith.constant dense<0.000000e+00> : vector<4x256xf32>
    %208 = tpu.matmul %206, %207, %cst_168 {dimension_numbers = #tpu.dot_dimension_numbers<[1], [0], [0], [1], [0, 0, 1, 1], [], []>} : vector<4x12xbf16>, vector<12x256xbf16>, vector<4x256xf32> -> vector<4x256xf32>
    %209 = arith.addf %205, %208 : vector<4x256xf32>
    %c0_169 = arith.constant 0 : index
    %c96 = arith.constant 96 : index
    %210 = vector.load %arg10[%c0_169, %c96] : memref<4x108xbf16, #tpu.memory_space<vmem>>, vector<4x12xbf16>
    %c0_170 = arith.constant 0 : index
    %c34_171 = arith.constant 34 : index
    %211 = vector.load %arg12[%c0_170, %c34_171] : memref<16x290xbf16, #tpu.memory_space<vmem>>, vector<12x256xbf16>
    %cst_172 = arith.constant dense<0.000000e+00> : vector<4x256xf32>
    %212 = tpu.matmul %210, %211, %cst_172 {dimension_numbers = #tpu.dot_dimension_numbers<[1], [0], [0], [1], [0, 0, 1, 1], [], []>} : vector<4x12xbf16>, vector<12x256xbf16>, vector<4x256xf32> -> vector<4x256xf32>
    %213 = arith.addf %209, %212 : vector<4x256xf32>
    %214 = vector.broadcast %24 : vector<1x256xf32> to vector<4x256xf32>
    %215 = arith.mulf %213, %214 : vector<4x256xf32>
    %216 = arith.addf %200, %215 : vector<4x256xf32>
    %c0_173 = arith.constant 0 : index
    %c12_174 = arith.constant 12 : index
    %c0_175 = arith.constant 0 : index
    %217 = vector.load %arg11[%c0_173, %c12_174, %c0_175] : memref<1x16x256xf32, #tpu.memory_space<vmem>>, vector<1x4x256xf32>
    %218 = vector.shape_cast %217 : vector<1x4x256xf32> to vector<4x256xf32>
    %219 = vector.shape_cast %216 : vector<4x256xf32> to vector<1x4x256xf32>
    tpu.vector_store %arg11[%c0_173, %c12_174, %c0_175], %219 {strides = array<i32>} : memref<1x16x256xf32, #tpu.memory_space<vmem>>, vector<1x4x256xf32>,
    return
  }
  func.func @transform_0(%arg0: i32) -> (i32, i32, i32) {
    %c0_i32 = arith.constant 0 : i32
    %c0_i32_0 = arith.constant 0 : i32
    %c0_i32_1 = arith.constant 0 : i32
    return %arg0, %c0_i32, %c0_i32_0 : i32, i32, i32
  }
  func.func @transform_1(%arg0: i32) -> (i32, i32) {
    %c0_i32 = arith.constant 0 : i32
    %c0_i32_0 = arith.constant 0 : i32
    %c0_i32_1 = arith.constant 0 : i32
    return %c0_i32, %c0_i32_0 : i32, i32
  }
  func.func @transform_2(%arg0: i32) -> (i32, i32) {
    %c0_i32 = arith.constant 0 : i32
    %c0_i32_0 = arith.constant 0 : i32
    %c0_i32_1 = arith.constant 0 : i32
    return %c0_i32, %c0_i32_0 : i32, i32
  }
  func.func @transform_3(%arg0: i32) -> (i32, i32) {
    %c0_i32 = arith.constant 0 : i32
    %c0_i32_0 = arith.constant 0 : i32
    %c0_i32_1 = arith.constant 0 : i32
    return %c0_i32, %c0_i32_0 : i32, i32
  }
  func.func @transform_4(%arg0: i32) -> (i32, i32) {
    %c0_i32 = arith.constant 0 : i32
    %c0_i32_0 = arith.constant 0 : i32
    %c0_i32_1 = arith.constant 0 : i32
    return %c0_i32, %c0_i32_0 : i32, i32
  }
  func.func @transform_5(%arg0: i32) -> (i32, i32) {
    %c0_i32 = arith.constant 0 : i32
    %c0_i32_0 = arith.constant 0 : i32
    %c0_i32_1 = arith.constant 0 : i32
    return %c0_i32, %c0_i32_0 : i32, i32
  }
  func.func @transform_6(%arg0: i32) -> (i32, i32) {
    %c0_i32 = arith.constant 0 : i32
    %c0_i32_0 = arith.constant 0 : i32
    %c0_i32_1 = arith.constant 0 : i32
    return %c0_i32, %c0_i32_0 : i32, i32
  }
  func.func @transform_7(%arg0: i32) -> (i32, i32) {
    %c0_i32 = arith.constant 0 : i32
    %c0_i32_0 = arith.constant 0 : i32
    %c0_i32_1 = arith.constant 0 : i32
    return %c0_i32, %c0_i32_0 : i32, i32
  }
  func.func @transform_8(%arg0: i32) -> (i32, i32) {
    %c0_i32 = arith.constant 0 : i32
    %c0_i32_0 = arith.constant 0 : i32
    %c0_i32_1 = arith.constant 0 : i32
    return %c0_i32, %c0_i32_0 : i32, i32
  }
  func.func @transform_9(%arg0: i32) -> (i32, i32) {
    %c0_i32 = arith.constant 0 : i32
    %c0_i32_0 = arith.constant 0 : i32
    %c0_i32_1 = arith.constant 0 : i32
    return %c0_i32, %c0_i32_0 : i32, i32
  }
  func.func @transform_10(%arg0: i32) -> (i32, i32, i32) {
    %c0_i32 = arith.constant 0 : i32
    %c0_i32_0 = arith.constant 0 : i32
    %c0_i32_1 = arith.constant 0 : i32
    return %arg0, %c0_i32, %c0_i32_0 : i32, i32, i32
  }
}

</mosaic_0001>

<llo_original>
// kernel: tpu_custom_call.1
$region0: #{tpu_custom_call.1}
  #allocation0 [shape = 'u32[]', space=smem, size = 0x4, offset = 0x4, fixed_abs, tag = 'smem constant byte address 0x4 - core index']
  #allocation1 [shape = 'u32[144,128]{1,0:T(1,128)}', space=vmem, size = 0x12000, scoped, tag = 'internal scratch']
  #allocation2 [shape = 'bf16[16,290]{1,0:T(16,128)(2,1)}', space=vmem, size = 0x3000, scoped, tag = 'scratch operand']
  %s0 = inlined_call_operand.vmem [shape: f32[2,4,256], index: 0, kind: input, shape index: {}]
  %s1 = inlined_call_operand.vmem [shape: f32[4,1], index: 1, kind: input, shape index: {}]
  %s2 = inlined_call_operand.vmem [shape: f32[4,1], index: 2, kind: input, shape index: {}]
  %s3 = inlined_call_operand.vmem [shape: bf16[4,36], index: 3, kind: input, shape index: {}]
  %s4 = inlined_call_operand.vmem [shape: f32[8,1], index: 4, kind: input, shape index: {}]
  %s5 = inlined_call_operand.vmem [shape: f32[8,1], index: 5, kind: input, shape index: {}]
  %s6 = inlined_call_operand.vmem [shape: bf16[4,72], index: 6, kind: input, shape index: {}]
  %s7 = inlined_call_operand.vmem [shape: f32[12,1], index: 7, kind: input, shape index: {}]
  %s8 = inlined_call_operand.vmem [shape: f32[12,1], index: 8, kind: input, shape index: {}]
  %s9 = inlined_call_operand.vmem [shape: bf16[4,108], index: 9, kind: input, shape index: {}]
  %s10 = inlined_call_operand.hbm [shape: f32[2,16,256], index: 10, kind: output, shape index: {}]
  %s11 = sld [smem:[#allocation0]]
  $region73: #{tpu_custom_call.1} parent=0
    _
  %s13 = ssub.s32 1, %s11
  %s14 = scalar_select 0, %s13, %s11
  $region1: #{tpu_custom_call.1} parent=0
    #allocation3 [shape = 'u8[32768]{0}', space=vmem, size = 0x8000, scoped, tag = 'output window, operand 0']
    #allocation4 [shape = 's32[2]{0}', space=sflag, size = 0x8, scoped, tag = 'scoped memory for tpu_custom_call.1']
    %15 = vsyncpa [#allocation4], 0
    %s16 = scalar_lea.sflag [#allocation4], 1
    %17 = vsyncpa %s16, 0
    loop: start=0, step=1, limit=4
    $region2: #{tpu_custom_call.1} parent=1 // loop_pre_header
      _
    $region3: #{tpu_custom_call.1} parent=1 // loop_header
      %s19 = sphi 0, %s23
      %p20 = scmp.ge.s32.totalorder %s19, 4
      %s29 = sphi 0, %s31
      %s32 = sphi 0, %s29
      %s33 = sphi 0, %s32
      %s49 = sphi 0, %s33
      %s53 = sphi 0, %s53
      %s55 = sphi 0, %s53
      %s56 = sphi 0, %s55
      %s70 = sphi 0, %s56
      %s74 = sphi 0, %s74
      %s76 = sphi 0, %s74
      %s77 = sphi 0, %s76
      %s91 = sphi 0, %s77
      %s95 = sphi 0, %s95
      %s97 = sphi 0, %s95
      %s98 = sphi 0, %s97
      %s112 = sphi 0, %s98
      %s116 = sphi 0, %s116
      %s118 = sphi 0, %s116
      %s119 = sphi 0, %s118
      %s133 = sphi 0, %s119
      %s137 = sphi 0, %s137
      %s139 = sphi 0, %s137
      %s140 = sphi 0, %s139
      %s154 = sphi 0, %s140
      %s158 = sphi 0, %s158
      %s160 = sphi 0, %s158
      %s161 = sphi 0, %s160
      %s175 = sphi 0, %s161
      %s179 = sphi 0, %s179
      %s181 = sphi 0, %s179
      %s182 = sphi 0, %s181
      %s196 = sphi 0, %s182
      %s200 = sphi 0, %s200
      %s202 = sphi 0, %s200
      %s203 = sphi 0, %s202
      %s217 = sphi 0, %s203
      %s221 = sphi 0, %s221
      %s223 = sphi 0, %s221
      %s224 = sphi 0, %s223
      %s238 = sphi 0, %s224
      %s244 = sphi 0, %s246
      %s247 = sphi 0, %s244
      %s248 = sphi 0, %s247
      %s264 = sphi 0, %s248
    $region4: #{tpu_custom_call.1} parent=1 // loop_header_branch
      %22 = sbr.rel (%p20) target = $region8
    $region5: #{tpu_custom_call.1} parent=1 // loop_body
      %s24 = ssub.s32 %s19, 1
      %s25 = ssub.s32 %s19, 2
      %s26 = sadd.s32 %s19, 1
      %s27 = ssub.s32 %s19, %s26
      %p28 = scmp.eq.s32.totalorder %s27, 0
      %s30 = sadd.s32 %s29, 1
      %s31 = scalar_select %p28, %s29, %s30
      %p34 = pneg %p28
      %p35 = scmp.eq.s32.totalorder %s19, 1
      %p36 = por %p34, %p35
      %p37 = scmp.ne.s32.totalorder %s29, %s32
      %p38 = scmp.eq.s32.totalorder %s19, 0
      %p39 = por %p37, %p38
      %p40 = scmp.ne.s32.totalorder %s29, %s32
      %p41 = scmp.eq.s32.totalorder %s24, 1
      %p42 = por %p40, %p41
      %p43 = scmp.ne.s32.totalorder %s32, %s33
      %p44 = scmp.eq.s32.totalorder %s24, 0
      %p45 = por %p43, %p44
      %p46 = scmp.ne.s32.totalorder %s32, %s33
      %p47 = scmp.eq.s32.totalorder %s25, 1
      %p48 = por %p46, %p47
      %p50 = scmp.ne.s32.totalorder %s33, %s49
      %p51 = scmp.eq.s32.totalorder %s25, 0
      %p52 = por %p50, %p51
      %s54 = sadd.s32 %s53, 1
      %p57 = scmp.eq.s32.totalorder %s19, 1
      %p58 = scmp.ne.s32.totalorder %s53, %s55
      %p59 = scmp.eq.s32.totalorder %s19, 0
      %p60 = por %p58, %p59
      %p61 = scmp.ne.s32.totalorder %s53, %s55
      %p62 = scmp.eq.s32.totalorder %s24, 1
      %p63 = por %p61, %p62
      %p64 = scmp.ne.s32.totalorder %s55, %s56
      %p65 = scmp.eq.s32.totalorder %s24, 0
      %p66 = por %p64, %p65
      %p67 = scmp.ne.s32.totalorder %s55, %s56
      %p68 = scmp.eq.s32.totalorder %s25, 1
      %p69 = por %p67, %p68
      %p71 = scmp.ne.s32.totalorder %s56, %s70
      %p72 = scmp.eq.s32.totalorder %s25, 0
      %p73 = por %p71, %p72
      %s75 = sadd.s32 %s74, 1
      %p78 = scmp.eq.s32.totalorder %s19, 1
      %p79 = scmp.ne.s32.totalorder %s74, %s76
      %p80 = scmp.eq.s32.totalorder %s19, 0
      %p81 = por %p79, %p80
      %p82 = scmp.ne.s32.totalorder %s74, %s76
      %p83 = scmp.eq.s32.totalorder %s24, 1
      %p84 = por %p82, %p83
      %p85 = scmp.ne.s32.totalorder %s76, %s77
      %p86 = scmp.eq.s32.totalorder %s24, 0
      %p87 = por %p85, %p86
      %p88 = scmp.ne.s32.totalorder %s76, %s77
      %p89 = scmp.eq.s32.totalorder %s25, 1
      %p90 = por %p88, %p89
      %p92 = scmp.ne.s32.totalorder %s77, %s91
      %p93 = scmp.eq.s32.totalorder %s25, 0
      %p94 = por %p92, %p93
      %s96 = sadd.s32 %s95, 1
      %p99 = scmp.eq.s32.totalorder %s19, 1
      %p100 = scmp.ne.s32.totalorder %s95, %s97
      %p101 = scmp.eq.s32.totalorder %s19, 0
      %p102 = por %p100, %p101
      %p103 = scmp.ne.s32.totalorder %s95, %s97
      %p104 = scmp.eq.s32.totalorder %s24, 1
      %p105 = por %p103, %p104
      %p106 = scmp.ne.s32.totalorder %s97, %s98
      %p107 = scmp.eq.s32.totalorder %s24, 0
      %p108 = por %p106, %p107
      %p109 = scmp.ne.s32.totalorder %s97, %s98
      %p110 = scmp.eq.s32.totalorder %s25, 1
      %p111 = por %p109, %p110
      %p113 = scmp.ne.s32.totalorder %s98, %s112
      %p114 = scmp.eq.s32.totalorder %s25, 0
      %p115 = por %p113, %p114
      %s117 = sadd.s32 %s116, 1
      %p120 = scmp.eq.s32.totalorder %s19, 1
      %p121 = scmp.ne.s32.totalorder %s116, %s118
      %p122 = scmp.eq.s32.totalorder %s19, 0
      %p123 = por %p121, %p122
      %p124 = scmp.ne.s32.totalorder %s116, %s118
      %p125 = scmp.eq.s32.totalorder %s24, 1
      %p126 = por %p124, %p125
      %p127 = scmp.ne.s32.totalorder %s118, %s119
      %p128 = scmp.eq.s32.totalorder %s24, 0
      %p129 = por %p127, %p128
      %p130 = scmp.ne.s32.totalorder %s118, %s119
      %p131 = scmp.eq.s32.totalorder %s25, 1
      %p132 = por %p130, %p131
      %p134 = scmp.ne.s32.totalorder %s119, %s133
      %p135 = scmp.eq.s32.totalorder %s25, 0
      %p136 = por %p134, %p135
      %s138 = sadd.s32 %s137, 1
      %p141 = scmp.eq.s32.totalorder %s19, 1
      %p142 = scmp.ne.s32.totalorder %s137, %s139
      %p143 = scmp.eq.s32.totalorder %s19, 0
      %p144 = por %p142, %p143
      %p145 = scmp.ne.s32.totalorder %s137, %s139
      %p146 = scmp.eq.s32.totalorder %s24, 1
      %p147 = por %p145, %p146
      %p148 = scmp.ne.s32.totalorder %s139, %s140
      %p149 = scmp.eq.s32.totalorder %s24, 0
      %p150 = por %p148, %p149
      %p151 = scmp.ne.s32.totalorder %s139, %s140
      %p152 = scmp.eq.s32.totalorder %s25, 1
      %p153 = por %p151, %p152
      %p155 = scmp.ne.s32.totalorder %s140, %s154
      %p156 = scmp.eq.s32.totalorder %s25, 0
      %p157 = por %p155, %p156
      %s159 = sadd.s32 %s158, 1
      %p162 = scmp.eq.s32.totalorder %s19, 1
      %p163 = scmp.ne.s32.totalorder %s158, %s160
      %p164 = scmp.eq.s32.totalorder %s19, 0
      %p165 = por %p163, %p164
      %p166 = scmp.ne.s32.totalorder %s158, %s160
      %p167 = scmp.eq.s32.totalorder %s24, 1
      %p168 = por %p166, %p167
      %p169 = scmp.ne.s32.totalorder %s160, %s161
      %p170 = scmp.eq.s32.totalorder %s24, 0
      %p171 = por %p169, %p170
      %p172 = scmp.ne.s32.totalorder %s160, %s161
      %p173 = scmp.eq.s32.totalorder %s25, 1
      %p174 = por %p172, %p173
      %p176 = scmp.ne.s32.totalorder %s161, %s175
      %p177 = scmp.eq.s32.totalorder %s25, 0
      %p178 = por %p176, %p177
      %s180 = sadd.s32 %s179, 1
      %p183 = scmp.eq.s32.totalorder %s19, 1
      %p184 = scmp.ne.s32.totalorder %s179, %s181
      %p185 = scmp.eq.s32.totalorder %s19, 0
      %p186 = por %p184, %p185
      %p187 = scmp.ne.s32.totalorder %s179, %s181
      %p188 = scmp.eq.s32.totalorder %s24, 1
      %p189 = por %p187, %p188
      %p190 = scmp.ne.s32.totalorder %s181, %s182
      %p191 = scmp.eq.s32.totalorder %s24, 0
      %p192 = por %p190, %p191
      %p193 = scmp.ne.s32.totalorder %s181, %s182
      %p194 = scmp.eq.s32.totalorder %s25, 1
      %p195 = por %p193, %p194
      %p197 = scmp.ne.s32.totalorder %s182, %s196
      %p198 = scmp.eq.s32.totalorder %s25, 0
      %p199 = por %p197, %p198
      %s201 = sadd.s32 %s200, 1
      %p204 = scmp.eq.s32.totalorder %s19, 1
      %p205 = scmp.ne.s32.totalorder %s200, %s202
      %p206 = scmp.eq.s32.totalorder %s19, 0
      %p207 = por %p205, %p206
      %p208 = scmp.ne.s32.totalorder %s200, %s202
      %p209 = scmp.eq.s32.totalorder %s24, 1
      %p210 = por %p208, %p209
      %p211 = scmp.ne.s32.totalorder %s202, %s203
      %p212 = scmp.eq.s32.totalorder %s24, 0
      %p213 = por %p211, %p212
      %p214 = scmp.ne.s32.totalorder %s202, %s203
      %p215 = scmp.eq.s32.totalorder %s25, 1
      %p216 = por %p214, %p215
      %p218 = scmp.ne.s32.totalorder %s203, %s217
      %p219 = scmp.eq.s32.totalorder %s25, 0
      %p220 = por %p218, %p219
      %s222 = sadd.s32 %s221, 1
      %p225 = scmp.eq.s32.totalorder %s19, 1
      %p226 = scmp.ne.s32.totalorder %s221, %s223
      %p227 = scmp.eq.s32.totalorder %s19, 0
      %p228 = por %p226, %p227
      %p229 = scmp.ne.s32.totalorder %s221, %s223
      %p230 = scmp.eq.s32.totalorder %s24, 1
      %p231 = por %p229, %p230
      %p232 = scmp.ne.s32.totalorder %s223, %s224
      %p233 = scmp.eq.s32.totalorder %s24, 0
      %p234 = por %p232, %p233
      %p235 = scmp.ne.s32.totalorder %s223, %s224
      %p236 = scmp.eq.s32.totalorder %s25, 1
      %p237 = por %p235, %p236
      %p239 = scmp.ne.s32.totalorder %s224, %s238
      %p240 = scmp.eq.s32.totalorder %s25, 0
      %p241 = por %p239, %p240
      %s242 = ssub.s32 %s19, %s26
      %p243 = scmp.eq.s32.totalorder %s242, 0
      %s245 = sadd.s32 %s244, 1
      %s246 = scalar_select %p243, %s244, %s245
      %p249 = pneg %p243
      %p250 = scmp.eq.s32.totalorder %s19, 1
      %p251 = por %p249, %p250
      %p252 = scmp.ne.s32.totalorder %s244, %s247
      %p253 = scmp.eq.s32.totalorder %s19, 0
      %p254 = por %p252, %p253
      %p255 = scmp.ne.s32.totalorder %s244, %s247
      %p256 = scmp.eq.s32.totalorder %s24, 1
      %p257 = por %p255, %p256
      %p258 = scmp.ne.s32.totalorder %s247, %s248
      %p259 = scmp.eq.s32.totalorder %s24, 0
      %p260 = por %p258, %p259
      %p261 = scmp.ne.s32.totalorder %s247, %s248
      %p262 = scmp.eq.s32.totalorder %s25, 1
      %p263 = por %p261, %p262
      %p265 = scmp.ne.s32.totalorder %s248, %s264
      %p266 = scmp.eq.s32.totalorder %s25, 0
      %p267 = por %p265, %p266
      %p268 = scmp.le.s32.totalorder 1, %s19
      %p269 = scmp.lt.s32.totalorder %s19, 3
      %p270 = pnand %p268, %p269
      %p271 = pneg %p270
      // Predicated region
      $region9: #{tpu_custom_call.1} parent=5 // pred_check
        _
      $region10: #{tpu_custom_call.1} parent=5 // pred_check_branch
        %273 = sbr.rel (%p270) target = $region12
      $region11: #{tpu_custom_call.1} parent=5 // pred_region
        %s274 = ssub.s32 %s19, 1
        // Predicated region
        $region13: #{tpu_custom_call.1} parent=11 // pred_check
          %p275 = pneg %p66
        $region14: #{tpu_custom_call.1} parent=11 // pred_check_branch
          %277 = sbr.rel (%p275) target = $region16
        $region15: #{tpu_custom_call.1} parent=11 // pred_region
          _
        $region16: #{tpu_custom_call.1} parent=11 // pred_fallthru
          _
        // Predicated region
        $region17: #{tpu_custom_call.1} parent=11 // pred_check
          %p278 = pneg %p87
        $region18: #{tpu_custom_call.1} parent=11 // pred_check_branch
          %280 = sbr.rel (%p278) target = $region20
        $region19: #{tpu_custom_call.1} parent=11 // pred_region
          _
        $region20: #{tpu_custom_call.1} parent=11 // pred_fallthru
          _
        // Predicated region
        $region21: #{tpu_custom_call.1} parent=11 // pred_check
          %p281 = pneg %p108
        $region22: #{tpu_custom_call.1} parent=11 // pred_check_branch
          %283 = sbr.rel (%p281) target = $region24
        $region23: #{tpu_custom_call.1} parent=11 // pred_region
          _
        $region24: #{tpu_custom_call.1} parent=11 // pred_fallthru
          _
        // Predicated region
        $region25: #{tpu_custom_call.1} parent=11 // pred_check
          %p284 = pneg %p129
        $region26: #{tpu_custom_call.1} parent=11 // pred_check_branch
          %286 = sbr.rel (%p284) target = $region28
        $region27: #{tpu_custom_call.1} parent=11 // pred_region
          _
        $region28: #{tpu_custom_call.1} parent=11 // pred_fallthru
          _
        // Predicated region
        $region29: #{tpu_custom_call.1} parent=11 // pred_check
          %p287 = pneg %p150
        $region30: #{tpu_custom_call.1} parent=11 // pred_check_branch
          %289 = sbr.rel (%p287) target = $region32
        $region31: #{tpu_custom_call.1} parent=11 // pred_region
          _
        $region32: #{tpu_custom_call.1} parent=11 // pred_fallthru
          _
        // Predicated region
        $region33: #{tpu_custom_call.1} parent=11 // pred_check
          %p290 = pneg %p171
        $region34: #{tpu_custom_call.1} parent=11 // pred_check_branch
          %292 = sbr.rel (%p290) target = $region36
        $region35: #{tpu_custom_call.1} parent=11 // pred_region
          _
        $region36: #{tpu_custom_call.1} parent=11 // pred_fallthru
          _
        // Predicated region
        $region37: #{tpu_custom_call.1} parent=11 // pred_check
          %p293 = pneg %p192
        $region38: #{tpu_custom_call.1} parent=11 // pred_check_branch
          %295 = sbr.rel (%p293) target = $region40
        $region39: #{tpu_custom_call.1} parent=11 // pred_region
          _
        $region40: #{tpu_custom_call.1} parent=11 // pred_fallthru
          _
        // Predicated region
        $region41: #{tpu_custom_call.1} parent=11 // pred_check
          %p296 = pneg %p213
        $region42: #{tpu_custom_call.1} parent=11 // pred_check_branch
          %298 = sbr.rel (%p296) target = $region44
        $region43: #{tpu_custom_call.1} parent=11 // pred_region
          _
        $region44: #{tpu_custom_call.1} parent=11 // pred_fallthru
          _
        // Predicated region
        $region45: #{tpu_custom_call.1} parent=11 // pred_check
          %p299 = pneg %p234
        $region46: #{tpu_custom_call.1} parent=11 // pred_check_branch
          %301 = sbr.rel (%p299) target = $region48
        $region47: #{tpu_custom_call.1} parent=11 // pred_region
          _
        $region48: #{tpu_custom_call.1} parent=11 // pred_fallthru
          _
      $region12: #{tpu_custom_call.1} parent=5 // pred_fallthru
        _
      %p302 = scmp.lt.s32.totalorder %s19, 2
      // Predicated region
      $region49: #{tpu_custom_call.1} parent=5 // pred_check
        %p303 = pneg %p302
      $region50: #{tpu_custom_call.1} parent=5 // pred_check_branch
        %305 = sbr.rel (%p303) target = $region52
      $region51: #{tpu_custom_call.1} parent=5 // pred_region
        // Predicated region
        $region53: #{tpu_custom_call.1} parent=51 // pred_check
          %p306 = pneg %p39
        $region54: #{tpu_custom_call.1} parent=51 // pred_check_branch
          %308 = sbr.rel (%p306) target = $region56
        $region55: #{tpu_custom_call.1} parent=51 // pred_region
          %p309 = scmp.lt.s32.totalorder %s19, 1
          %s310 = scalar_select %p309, %s19, 1
          %s311 = smul.addr %s310, 2
          %s312 = smul.addr %s311, 4
          %s313 = scalar_lea.vmem %s0, %s312
        $region56: #{tpu_custom_call.1} parent=51 // pred_fallthru
          _
      $region52: #{tpu_custom_call.1} parent=5 // pred_fallthru
        _
      %p314 = scmp.le.s32.totalorder 1, %s19
      %p315 = scmp.lt.s32.totalorder %s19, 3
      %p316 = pnand %p314, %p315
      %p317 = pneg %p316
      // Predicated region
      $region57: #{tpu_custom_call.1} parent=5 // pred_check
        _
      $region58: #{tpu_custom_call.1} parent=5 // pred_check_branch
        %319 = sbr.rel (%p316) target = $region60
      $region59: #{tpu_custom_call.1} parent=5 // pred_region
        %s320 = ssub.s32 %s19, 1
        %p321 = scmp.lt.s32.totalorder %s24, 1
        %s322 = scalar_select %p321, %s24, 1
        %s323 = smul.addr %s322, 2
        %s324 = smul.addr %s323, 4
        %s325 = scalar_lea.vmem %s0, %s324
        %p326 = pneg %p45
        %p327 = pneg %p42
        %p328 = pneg %p66
        %p329 = pneg %p63
        %p330 = pneg %p87
        %p331 = pneg %p84
        %p332 = pneg %p108
        %p333 = pneg %p105
        %p334 = pneg %p129
        %p335 = pneg %p126
        %p336 = pneg %p150
        %p337 = pneg %p147
        %p338 = pneg %p171
        %p339 = pneg %p168
        %p340 = pneg %p192
        %p341 = pneg %p189
        %p342 = pneg %p213
        %p343 = pneg %p210
        %p344 = pneg %p234
        %p345 = pneg %p231
        %p346 = pneg %p260
        %p347 = pneg %p257
        %s348 = sand.u32 %s247, 1
        %s349 = scalar_lea.sflag [#allocation4], %s348
        %s350 = sand.u32 %s247, 1
        %s351 = smul.addr %s350, 32
        %s352 = scalar_lea.vmem [#allocation3], %s351
        %p353 = scmp.lt.s32.totalorder %s24, 1
        %s354 = scalar_select %p353, %s24, 1
        %s355 = smul.addr %s354, 2
        %s356 = smul.addr %s355, 4
        %s357 = scalar_lea.vmem %s0, %s356
        %v359 = vlaneseq
        %v360 = vand.u32 %v359, 127
        %v361 = vadd.s32 %v360, 128
        %vm362 = vcmp.lt.s32.totalorder %v360, 0
        %v363 = vsub.s32 0, %v360
        %v364 = vsel %vm362, %v363, %v360
        %v365 = vshrl.u32 %v364, 4
        %v366 = vand.u32 %v364, 15
        %v367 = vsub.s32 0, %v366
        %v368 = vsel %vm362, %v367, %v366
        %vm369 = vcmp.lt.s32.totalorder %v361, 0
        %v370 = vsub.s32 0, %v361
        %v371 = vsel %vm369, %v370, %v361
        %v372 = vshrl.u32 %v371, 4
        %v373 = vand.u32 %v371, 15
        %v374 = vsub.s32 0, %v373
        %v375 = vsel %vm369, %v374, %v373
        %vm376 = vcmp.ne.s32.totalorder %v368, 0
        %vm377 = vcmp.ne.s32.totalorder %v375, 0
        %vm378 = vcmp.lt.s32.totalorder %v368, 0
        %vm379 = vcmp.lt.s32.totalorder %v375, 0
        %vm380 = vmand %vm378, %vm376
        %vm381 = vmand %vm379, %vm377
        %v382 = vadd.s32 %v368, 16
        %v383 = vadd.s32 %v375, 16
        %v384 = vsel %vm380, %v382, %v368
        %v385 = vsel %vm381, %v383, %v375
        %vm386 = vcmp.ne.s32.totalorder %v384, 0
        %vm387 = vcmp.ne.s32.totalorder %v385, 0
        %v388 = vsel %vm386, 1, 0
        %v389 = vsel %vm387, 1, 0
        %v390 = vcvt.s32.f32 %v388
        %v391 = vcvt.s32.f32 %v389
        %vm392 = vcmp.ne.s32.totalorder %v384, 15
        %vm393 = vcmp.ne.s32.totalorder %v385, 15
        %v394 = vsel %vm392, 1, 0
        %v395 = vsel %vm393, 1, 0
        %v396 = vcvt.s32.f32 %v394
        %v397 = vcvt.s32.f32 %v395
        %vm398 = vcmask 138240
        %399 = vst.msk [vmem:[#allocation2] sm:$0xff] %vm398, 0
        %vm400 = vcmask 277640
        %401 = vst.msk [vmem:[#allocation2 + $0x10] sm:$0xff] %vm400, 0
        %v402 = vld [vmem:[%s357] sm:$0xff]
        %v404 = vcombine.high %v402, %v402
        %406 = vst [vmem:[%s352] sm:$0xf] %v402
        %407 = vst [vmem:[%s352 + $0x8] sm:$0xf] %v404
        %v408 = vld [vmem:[%s352] sm:$0xf]
        %v409 = vld [vmem:[%s352 + $0x8] sm:$0xf]
        %v410 = vld [vmem:[%s1] sm:$0xf]
        %412 = vset.pattern.permute.xlu0 0
        %413 = vperm.xlu0 %412, %v410
        %v414 = vpop.permute.xlu0 %413
        %v416 = vmul.f32 %v408, %v414
        %v417 = vmul.f32 %v409, %v414
        %v418 = vld [vmem:[%s2] sm:$0xf]
        %420 = vset.pattern.permute.xlu0 0
        %421 = vperm.xlu0 %420, %v418
        %v422 = vpop.permute.xlu0 %421
        %v424 = vadd.f32 %v416, %v422
        %v425 = vadd.f32 %v417, %v422
        %v426 = vmax.f32 %v424, 0.0
        %v427 = vmax.f32 %v425, 0.0
        %v428 = vpack.c.bf16 %v426, %v426
        %v429 = vpack.c.bf16 %v427, %v427
        %432 = vrot.lane.b32.xlu0 %v428, 17
        %v433 = vpop.permute.xlu0 %432
        %434 = vrot.lane.b32.xlu0 %v429, 17
        %v435 = vpop.permute.xlu0 %434
        %vm436 = vcmask 138240
        %v437 = vsel %vm436, %v433, %v435
        %vm441 = vcmask 1041544
        %442 = vst.msk [vmem:[#allocation2] sm:$0x3] %vm441, %v433
        %443 = vst [vmem:[#allocation2 + $0x8] sm:$0x3] %v437
        %vm444 = vcmask 132096
        %445 = vst.msk [vmem:[#allocation2 + $0x10] sm:$0x3] %vm444, %v435
        %v446 = vld [vmem:[%s3] sm:$0x3]
        %v447 = vld [vmem:[#allocation2] sm:$0x3]
        %v448 = vld [vmem:[#allocation2 + $0x8] sm:$0x3]
        %v449 = vld [vmem:[#allocation2 + $0x10] sm:$0x3]
        %v452 = vunpack.c.l.s4 1983009808
        %v453 = vunpack.c.0.s8 %v452
        %v454 = vlaneseq
        %v455 = vshrl.u32 %v454, 7
        %v456 = vsub.s32 %v453, %v455
        %v457 = vrot.slane %v446, %v456
        %458 = vrot.lane.b32.xlu0 %v457, 116
        %v459 = vpop.permute.xlu0 %458
        %463 = vrot.lane.b32.xlu0 %v447, 112
        %v464 = vpop.permute.xlu0 %463
        %465 = vrot.lane.b32.xlu0 %v448, 112
        %v466 = vpop.permute.xlu0 %465
        %467 = vrot.lane.b32.xlu0 %v449, 112
        %v468 = vpop.permute.xlu0 %467
        %vm469 = vcmask 916480
        %v470 = vsel %vm469, %v464, %v466
        %v471 = vsel %vm469, %v466, %v468
        %vm472 = vcmask 31744
        %v474 = vsel %vm472, %v459, 0
        %vm476 = vcmask 1041408
        %v478 = vsel %vm476, %v470, 0
        %v481 = vsel %vm476, %v471, 0
        %483 = vmatprep.subr.bf16.mxu0 %v481
        %484 = vmatpush1.bf16.msra.mxu0 %v478
        %485 = vmatprep.subr.bf16.mxu0 0
        %486 = vmatpush1.bf16.msra.mxu0 0
        %487 = vmatprep.subr.bf16.mxu0 0
        %488 = vmatpush1.bf16.msra.mxu0 0
        %489 = vmatprep.subr.bf16.mxu0 0
        %490 = vmatpush1.bf16.msra.mxu0 0
        %491 = vmatprep.subr.bf16.mxu0 0
        %492 = vmatpush1.bf16.msra.mxu0 0
        %493 = vmatprep.subr.bf16.mxu0 0
        %494 = vmatpush1.bf16.msra.mxu0 0
        %495 = vmatprep.subr.bf16.mxu0 0
        %496 = vmatpush1.bf16.msra.mxu0 0
        %497 = vmatprep.subr.bf16.mxu0 0
        %498 = vmatpush1.bf16.msra.mxu0 0
        %499 = vmatprep.subr.bf16.mxu0 0
        %500 = vmatpush1.bf16.msra.mxu0 0
        %501 = vmatprep.subr.bf16.mxu0 0
        %502 = vmatpush1.bf16.msra.mxu0 0
        %503 = vmatprep.subr.bf16.mxu0 0
        %504 = vmatpush1.bf16.msra.mxu0 0
        %505 = vmatprep.subr.bf16.mxu0 0
        %506 = vmatpush1.bf16.msra.mxu0 0
        %507 = vmatprep.subr.bf16.mxu0 0
        %508 = vmatpush1.bf16.msra.mxu0 0
        %509 = vmatprep.subr.bf16.mxu0 0
        %510 = vmatpush1.bf16.msra.mxu0 0
        %511 = vmatprep.subr.bf16.mxu0 0
        %512 = vmatpush1.bf16.msra.mxu0 0
        %513 = vmatprep.subr.bf16.mxu0 0
        %514 = vmatpush1.bf16.msra.mxu0 0
        %515 = vmatprep.mubr.bf16.mxu0 0
        %516 = vmatmul.mubr.bf16.gmra.mrb[0].mxu0 %v474
        %v517 = vpop.f32.mrb[0].mxu0
        %v518 = vadd.f32 0.0, %v517
        %v519 = vpop.f32.mrb[0].mxu0
        %v520 = vadd.f32 0.0, %v519
        %v521 = vpop.f32.mrb[0].mxu0
        %v522 = vpop.f32.mrb[0].mxu0
        %523 = vdwg.mxu0
        %v525 = vsel %vm472, %v446, 0
        %v528 = vsel %vm476, %v447, 0
        %v531 = vsel %vm476, %v448, 0
        %533 = vmatprep.subr.bf16.mxu0 %v531
        %534 = vmatpush1.bf16.msra.mxu0 %v528
        %535 = vmatprep.subr.bf16.mxu0 0
        %536 = vmatpush1.bf16.msra.mxu0 0
        %537 = vmatprep.subr.bf16.mxu0 0
        %538 = vmatpush1.bf16.msra.mxu0 0
        %539 = vmatprep.subr.bf16.mxu0 0
        %540 = vmatpush1.bf16.msra.mxu0 0
        %541 = vmatprep.subr.bf16.mxu0 0
        %542 = vmatpush1.bf16.msra.mxu0 0
        %543 = vmatprep.subr.bf16.mxu0 0
        %544 = vmatpush1.bf16.msra.mxu0 0
        %545 = vmatprep.subr.bf16.mxu0 0
        %546 = vmatpush1.bf16.msra.mxu0 0
        %547 = vmatprep.subr.bf16.mxu0 0
        %548 = vmatpush1.bf16.msra.mxu0 0
        %549 = vmatprep.subr.bf16.mxu0 0
        %550 = vmatpush1.bf16.msra.mxu0 0
        %551 = vmatprep.subr.bf16.mxu0 0
        %552 = vmatpush1.bf16.msra.mxu0 0
        %553 = vmatprep.subr.bf16.mxu0 0
        %554 = vmatpush1.bf16.msra.mxu0 0
        %555 = vmatprep.subr.bf16.mxu0 0
        %556 = vmatpush1.bf16.msra.mxu0 0
        %557 = vmatprep.subr.bf16.mxu0 0
        %558 = vmatpush1.bf16.msra.mxu0 0
        %559 = vmatprep.subr.bf16.mxu0 0
        %560 = vmatpush1.bf16.msra.mxu0 0
        %561 = vmatprep.subr.bf16.mxu0 0
        %562 = vmatpush1.bf16.msra.mxu0 0
        %563 = vmatprep.subr.bf16.mxu0 0
        %564 = vmatpush1.bf16.msra.mxu0 0
        %565 = vmatprep.mubr.bf16.mxu0 0
        %566 = vmatmul.mubr.bf16.gmra.mrb[0].mxu0 %v525
        %v567 = vpop.f32.mrb[0].mxu0
        %v568 = vadd.f32 %v518, %v567
        %v569 = vpop.f32.mrb[0].mxu0
        %v570 = vadd.f32 %v520, %v569
        %v571 = vpop.f32.mrb[0].mxu0
        %v572 = vpop.f32.mrb[0].mxu0
        %573 = vdwg.mxu0
        %v574 = vld [vmem:[%s3] sm:$0x3]
        %v575 = vld [vmem:[#allocation2] sm:$0x3]
        %v576 = vld [vmem:[#allocation2 + $0x8] sm:$0x3]
        %v577 = vld [vmem:[#allocation2 + $0x10] sm:$0x3]
        %v580 = vunpack.c.l.s4 1983009808
        %v581 = vunpack.c.0.s8 %v580
        %v582 = vlaneseq
        %v583 = vshrl.u32 %v582, 7
        %v584 = vsub.s32 %v581, %v583
        %v585 = vrot.slane %v574, %v584
        %586 = vrot.lane.b32.xlu0 %v585, 104
        %v587 = vpop.permute.xlu0 %586
        %591 = vrot.lane.b32.xlu0 %v575, 96
        %v592 = vpop.permute.xlu0 %591
        %593 = vrot.lane.b32.xlu0 %v576, 96
        %v594 = vpop.permute.xlu0 %593
        %595 = vrot.lane.b32.xlu0 %v577, 96
        %v596 = vpop.permute.xlu0 %595
        %vm597 = vcmask 785408
        %v598 = vsel %vm597, %v592, %v594
        %v599 = vsel %vm597, %v594, %v596
        %v601 = vsel %vm472, %v587, 0
        %v604 = vsel %vm476, %v598, 0
        %v607 = vsel %vm476, %v599, 0
        %609 = vmatprep.subr.bf16.mxu0 %v607
        %610 = vmatpush1.bf16.msra.mxu0 %v604
        %611 = vmatprep.subr.bf16.mxu0 0
        %612 = vmatpush1.bf16.msra.mxu0 0
        %613 = vmatprep.subr.bf16.mxu0 0
        %614 = vmatpush1.bf16.msra.mxu0 0
        %615 = vmatprep.subr.bf16.mxu0 0
        %616 = vmatpush1.bf16.msra.mxu0 0
        %617 = vmatprep.subr.bf16.mxu0 0
        %618 = vmatpush1.bf16.msra.mxu0 0
        %619 = vmatprep.subr.bf16.mxu0 0
        %620 = vmatpush1.bf16.msra.mxu0 0
        %621 = vmatprep.subr.bf16.mxu0 0
        %622 = vmatpush1.bf16.msra.mxu0 0
        %623 = vmatprep.subr.bf16.mxu0 0
        %624 = vmatpush1.bf16.msra.mxu0 0
        %625 = vmatprep.subr.bf16.mxu0 0
        %626 = vmatpush1.bf16.msra.mxu0 0
        %627 = vmatprep.subr.bf16.mxu0 0
        %628 = vmatpush1.bf16.msra.mxu0 0
        %629 = vmatprep.subr.bf16.mxu0 0
        %630 = vmatpush1.bf16.msra.mxu0 0
        %631 = vmatprep.subr.bf16.mxu0 0
        %632 = vmatpush1.bf16.msra.mxu0 0
        %633 = vmatprep.subr.bf16.mxu0 0
        %634 = vmatpush1.bf16.msra.mxu0 0
        %635 = vmatprep.subr.bf16.mxu0 0
        %636 = vmatpush1.bf16.msra.mxu0 0
        %637 = vmatprep.subr.bf16.mxu0 0
        %638 = vmatpush1.bf16.msra.mxu0 0
        %639 = vmatprep.subr.bf16.mxu0 0
        %640 = vmatpush1.bf16.msra.mxu0 0
        %641 = vmatprep.mubr.bf16.mxu0 0
        %642 = vmatmul.mubr.bf16.gmra.mrb[0].mxu0 %v601
        %v643 = vpop.f32.mrb[0].mxu0
        %v644 = vadd.f32 0.0, %v643
        %v645 = vpop.f32.mrb[0].mxu0
        %v646 = vadd.f32 0.0, %v645
        %v647 = vpop.f32.mrb[0].mxu0
        %v648 = vpop.f32.mrb[0].mxu0
        %649 = vdwg.mxu0
        %v650 = vadd.f32 %v568, %v644
        %v651 = vadd.f32 %v570, %v646
        %v652 = vmul.f32 %v650, %v390
        %v653 = vmul.f32 %v651, %v391
        %v654 = vadd.f32 %v652, 0.0
        %v655 = vadd.f32 %v653, 0.0
        %v656 = vld [vmem:[%s3] sm:$0x3]
        %v657 = vld [vmem:[#allocation2] sm:$0x3]
        %v658 = vld [vmem:[#allocation2 + $0x8] sm:$0x3]
        %v659 = vld [vmem:[#allocation2 + $0x10] sm:$0x3]
        %v662 = vunpack.c.l.s4 1983009808
        %v663 = vunpack.c.0.s8 %v662
        %v664 = vlaneseq
        %v665 = vshrl.u32 %v664, 7
        %v666 = vsub.s32 %v663, %v665
        %v667 = vrot.slane %v656, %v666
        %668 = vrot.lane.b32.xlu0 %v667, 112
        %v669 = vpop.permute.xlu0 %668
        %673 = vrot.lane.b32.xlu0 %v657, 111
        %v674 = vpop.permute.xlu0 %673
        %675 = vrot.lane.b32.xlu0 %v658, 111
        %v676 = vpop.permute.xlu0 %675
        %677 = vrot.lane.b32.xlu0 %v659, 111
        %v678 = vpop.permute.xlu0 %677
        %vm679 = vcmask 908288
        %v680 = vsel %vm679, %v674, %v676
        %v681 = vsel %vm679, %v676, %v678
        %v683 = vsel %vm472, %v669, 0
        %v686 = vsel %vm476, %v680, 0
        %v689 = vsel %vm476, %v681, 0
        %691 = vmatprep.subr.bf16.mxu0 %v689
        %692 = vmatpush1.bf16.msra.mxu0 %v686
        %693 = vmatprep.subr.bf16.mxu0 0
        %694 = vmatpush1.bf16.msra.mxu0 0
        %695 = vmatprep.subr.bf16.mxu0 0
        %696 = vmatpush1.bf16.msra.mxu0 0
        %697 = vmatprep.subr.bf16.mxu0 0
        %698 = vmatpush1.bf16.msra.mxu0 0
        %699 = vmatprep.subr.bf16.mxu0 0
        %700 = vmatpush1.bf16.msra.mxu0 0
        %701 = vmatprep.subr.bf16.mxu0 0
        %702 = vmatpush1.bf16.msra.mxu0 0
        %703 = vmatprep.subr.bf16.mxu0 0
        %704 = vmatpush1.bf16.msra.mxu0 0
        %705 = vmatprep.subr.bf16.mxu0 0
        %706 = vmatpush1.bf16.msra.mxu0 0
        %707 = vmatprep.subr.bf16.mxu0 0
        %708 = vmatpush1.bf16.msra.mxu0 0
        %709 = vmatprep.subr.bf16.mxu0 0
        %710 = vmatpush1.bf16.msra.mxu0 0
        %711 = vmatprep.subr.bf16.mxu0 0
        %712 = vmatpush1.bf16.msra.mxu0 0
        %713 = vmatprep.subr.bf16.mxu0 0
        %714 = vmatpush1.bf16.msra.mxu0 0
        %715 = vmatprep.subr.bf16.mxu0 0
        %716 = vmatpush1.bf16.msra.mxu0 0
        %717 = vmatprep.subr.bf16.mxu0 0
        %718 = vmatpush1.bf16.msra.mxu0 0
        %719 = vmatprep.subr.bf16.mxu0 0
        %720 = vmatpush1.bf16.msra.mxu0 0
        %721 = vmatprep.subr.bf16.mxu0 0
        %722 = vmatpush1.bf16.msra.mxu0 0
        %723 = vmatprep.mubr.bf16.mxu0 0
        %724 = vmatmul.mubr.bf16.gmra.mrb[0].mxu0 %v683
        %v725 = vpop.f32.mrb[0].mxu0
        %v726 = vadd.f32 0.0, %v725
        %v727 = vpop.f32.mrb[0].mxu0
        %v728 = vadd.f32 0.0, %v727
        %v729 = vpop.f32.mrb[0].mxu0
        %v730 = vpop.f32.mrb[0].mxu0
        %731 = vdwg.mxu0
        %732 = vrot.lane.b32.xlu0 %v667, 124
        %v733 = vpop.permute.xlu0 %732
        %734 = vrot.lane.b32.xlu0 %v657, 127
        %v735 = vpop.permute.xlu0 %734
        %736 = vrot.lane.b32.xlu0 %v658, 127
        %v737 = vpop.permute.xlu0 %736
        %738 = vrot.lane.b32.xlu0 %v659, 127
        %v739 = vpop.permute.xlu0 %738
        %vm740 = vcmask 1039360
        %v741 = vsel %vm740, %v735, %v737
        %v742 = vsel %vm740, %v737, %v739
        %v744 = vsel %vm472, %v733, 0
        %v747 = vsel %vm476, %v741, 0
        %v750 = vsel %vm476, %v742, 0
        %752 = vmatprep.subr.bf16.mxu0 %v750
        %753 = vmatpush1.bf16.msra.mxu0 %v747
        %754 = vmatprep.subr.bf16.mxu0 0
        %755 = vmatpush1.bf16.msra.mxu0 0
        %756 = vmatprep.subr.bf16.mxu0 0
        %757 = vmatpush1.bf16.msra.mxu0 0
        %758 = vmatprep.subr.bf16.mxu0 0
        %759 = vmatpush1.bf16.msra.mxu0 0
        %760 = vmatprep.subr.bf16.mxu0 0
        %761 = vmatpush1.bf16.msra.mxu0 0
        %762 = vmatprep.subr.bf16.mxu0 0
        %763 = vmatpush1.bf16.msra.mxu0 0
        %764 = vmatprep.subr.bf16.mxu0 0
        %765 = vmatpush1.bf16.msra.mxu0 0
        %766 = vmatprep.subr.bf16.mxu0 0
        %767 = vmatpush1.bf16.msra.mxu0 0
        %768 = vmatprep.subr.bf16.mxu0 0
        %769 = vmatpush1.bf16.msra.mxu0 0
        %770 = vmatprep.subr.bf16.mxu0 0
        %771 = vmatpush1.bf16.msra.mxu0 0
        %772 = vmatprep.subr.bf16.mxu0 0
        %773 = vmatpush1.bf16.msra.mxu0 0
        %774 = vmatprep.subr.bf16.mxu0 0
        %775 = vmatpush1.bf16.msra.mxu0 0
        %776 = vmatprep.subr.bf16.mxu0 0
        %777 = vmatpush1.bf16.msra.mxu0 0
        %778 = vmatprep.subr.bf16.mxu0 0
        %779 = vmatpush1.bf16.msra.mxu0 0
        %780 = vmatprep.subr.bf16.mxu0 0
        %781 = vmatpush1.bf16.msra.mxu0 0
        %782 = vmatprep.subr.bf16.mxu0 0
        %783 = vmatpush1.bf16.msra.mxu0 0
        %784 = vmatprep.mubr.bf16.mxu0 0
        %785 = vmatmul.mubr.bf16.gmra.mrb[0].mxu0 %v744
        %v786 = vpop.f32.mrb[0].mxu0
        %v787 = vadd.f32 %v726, %v786
        %v788 = vpop.f32.mrb[0].mxu0
        %v789 = vadd.f32 %v728, %v788
        %v790 = vpop.f32.mrb[0].mxu0
        %v791 = vpop.f32.mrb[0].mxu0
        %792 = vdwg.mxu0
        %v793 = vld [vmem:[%s3] sm:$0x3]
        %v794 = vld [vmem:[#allocation2] sm:$0x3]
        %v795 = vld [vmem:[#allocation2 + $0x8] sm:$0x3]
        %v796 = vld [vmem:[#allocation2 + $0x10] sm:$0x3]
        %v799 = vunpack.c.l.s4 1983009808
        %v800 = vunpack.c.0.s8 %v799
        %v801 = vlaneseq
        %v802 = vshrl.u32 %v801, 7
        %v803 = vsub.s32 %v800, %v802
        %v804 = vrot.slane %v793, %v803
        %805 = vrot.lane.b32.xlu0 %v804, 100
        %v806 = vpop.permute.xlu0 %805
        %810 = vrot.lane.b32.xlu0 %v794, 95
        %v811 = vpop.permute.xlu0 %810
        %812 = vrot.lane.b32.xlu0 %v795, 95
        %v813 = vpop.permute.xlu0 %812
        %814 = vrot.lane.b32.xlu0 %v796, 95
        %v815 = vpop.permute.xlu0 %814
        %vm816 = vcmask 777216
        %v817 = vsel %vm816, %v811, %v813
        %v818 = vsel %vm816, %v813, %v815
        %v820 = vsel %vm472, %v806, 0
        %v823 = vsel %vm476, %v817, 0
        %v826 = vsel %vm476, %v818, 0
        %828 = vmatprep.subr.bf16.mxu0 %v826
        %829 = vmatpush1.bf16.msra.mxu0 %v823
        %830 = vmatprep.subr.bf16.mxu0 0
        %831 = vmatpush1.bf16.msra.mxu0 0
        %832 = vmatprep.subr.bf16.mxu0 0
        %833 = vmatpush1.bf16.msra.mxu0 0
        %834 = vmatprep.subr.bf16.mxu0 0
        %835 = vmatpush1.bf16.msra.mxu0 0
        %836 = vmatprep.subr.bf16.mxu0 0
        %837 = vmatpush1.bf16.msra.mxu0 0
        %838 = vmatprep.subr.bf16.mxu0 0
        %839 = vmatpush1.bf16.msra.mxu0 0
        %840 = vmatprep.subr.bf16.mxu0 0
        %841 = vmatpush1.bf16.msra.mxu0 0
        %842 = vmatprep.subr.bf16.mxu0 0
        %843 = vmatpush1.bf16.msra.mxu0 0
        %844 = vmatprep.subr.bf16.mxu0 0
        %845 = vmatpush1.bf16.msra.mxu0 0
        %846 = vmatprep.subr.bf16.mxu0 0
        %847 = vmatpush1.bf16.msra.mxu0 0
        %848 = vmatprep.subr.bf16.mxu0 0
        %849 = vmatpush1.bf16.msra.mxu0 0
        %850 = vmatprep.subr.bf16.mxu0 0
        %851 = vmatpush1.bf16.msra.mxu0 0
        %852 = vmatprep.subr.bf16.mxu0 0
        %853 = vmatpush1.bf16.msra.mxu0 0
        %854 = vmatprep.subr.bf16.mxu0 0
        %855 = vmatpush1.bf16.msra.mxu0 0
        %856 = vmatprep.subr.bf16.mxu0 0
        %857 = vmatpush1.bf16.msra.mxu0 0
        %858 = vmatprep.subr.bf16.mxu0 0
        %859 = vmatpush1.bf16.msra.mxu0 0
        %860 = vmatprep.mubr.bf16.mxu0 0
        %861 = vmatmul.mubr.bf16.gmra.mrb[0].mxu0 %v820
        %v862 = vpop.f32.mrb[0].mxu0
        %v863 = vadd.f32 0.0, %v862
        %v864 = vpop.f32.mrb[0].mxu0
        %v865 = vadd.f32 0.0, %v864
        %v866 = vpop.f32.mrb[0].mxu0
        %v867 = vpop.f32.mrb[0].mxu0
        %868 = vdwg.mxu0
        %v869 = vadd.f32 %v787, %v863
        %v870 = vadd.f32 %v789, %v865
        %v871 = vadd.f32 %v654, %v869
        %v872 = vadd.f32 %v655, %v870
        %v873 = vld [vmem:[%s3] sm:$0x3]
        %v874 = vld [vmem:[#allocation2] sm:$0x3]
        %v875 = vld [vmem:[#allocation2 + $0x8] sm:$0x3]
        %v876 = vld [vmem:[#allocation2 + $0x10] sm:$0x3]
        %v879 = vunpack.c.l.s4 1983009808
        %v880 = vunpack.c.0.s8 %v879
        %v881 = vlaneseq
        %v882 = vshrl.u32 %v881, 7
        %v883 = vsub.s32 %v880, %v882
        %v884 = vrot.slane %v873, %v883
        %885 = vrot.lane.b32.xlu0 %v884, 108
        %v886 = vpop.permute.xlu0 %885
        %890 = vrot.lane.b32.xlu0 %v874, 110
        %v891 = vpop.permute.xlu0 %890
        %892 = vrot.lane.b32.xlu0 %v875, 110
        %v893 = vpop.permute.xlu0 %892
        %894 = vrot.lane.b32.xlu0 %v876, 110
        %v895 = vpop.permute.xlu0 %894
        %vm896 = vcmask 900096
        %v897 = vsel %vm896, %v891, %v893
        %v898 = vsel %vm896, %v893, %v895
        %v900 = vsel %vm472, %v886, 0
        %v903 = vsel %vm476, %v897, 0
        %v906 = vsel %vm476, %v898, 0
        %908 = vmatprep.subr.bf16.mxu0 %v906
        %909 = vmatpush1.bf16.msra.mxu0 %v903
        %910 = vmatprep.subr.bf16.mxu0 0
        %911 = vmatpush1.bf16.msra.mxu0 0
        %912 = vmatprep.subr.bf16.mxu0 0
        %913 = vmatpush1.bf16.msra.mxu0 0
        %914 = vmatprep.subr.bf16.mxu0 0
        %915 = vmatpush1.bf16.msra.mxu0 0
        %916 = vmatprep.subr.bf16.mxu0 0
        %917 = vmatpush1.bf16.msra.mxu0 0
        %918 = vmatprep.subr.bf16.mxu0 0
        %919 = vmatpush1.bf16.msra.mxu0 0
        %920 = vmatprep.subr.bf16.mxu0 0
        %921 = vmatpush1.bf16.msra.mxu0 0
        %922 = vmatprep.subr.bf16.mxu0 0
        %923 = vmatpush1.bf16.msra.mxu0 0
        %924 = vmatprep.subr.bf16.mxu0 0
        %925 = vmatpush1.bf16.msra.mxu0 0
        %926 = vmatprep.subr.bf16.mxu0 0
        %927 = vmatpush1.bf16.msra.mxu0 0
        %928 = vmatprep.subr.bf16.mxu0 0
        %929 = vmatpush1.bf16.msra.mxu0 0
        %930 = vmatprep.subr.bf16.mxu0 0
        %931 = vmatpush1.bf16.msra.mxu0 0
        %932 = vmatprep.subr.bf16.mxu0 0
        %933 = vmatpush1.bf16.msra.mxu0 0
        %934 = vmatprep.subr.bf16.mxu0 0
        %935 = vmatpush1.bf16.msra.mxu0 0
        %936 = vmatprep.subr.bf16.mxu0 0
        %937 = vmatpush1.bf16.msra.mxu0 0
        %938 = vmatprep.subr.bf16.mxu0 0
        %939 = vmatpush1.bf16.msra.mxu0 0
        %940 = vmatprep.mubr.bf16.mxu0 0
        %941 = vmatmul.mubr.bf16.gmra.mrb[0].mxu0 %v900
        %v942 = vpop.f32.mrb[0].mxu0
        %v943 = vadd.f32 0.0, %v942
        %v944 = vpop.f32.mrb[0].mxu0
        %v945 = vadd.f32 0.0, %v944
        %v946 = vpop.f32.mrb[0].mxu0
        %v947 = vpop.f32.mrb[0].mxu0
        %948 = vdwg.mxu0
        %949 = vrot.lane.b32.xlu0 %v884, 120
        %v950 = vpop.permute.xlu0 %949
        %951 = vrot.lane.b32.xlu0 %v874, 126
        %v952 = vpop.permute.xlu0 %951
        %953 = vrot.lane.b32.xlu0 %v875, 126
        %v954 = vpop.permute.xlu0 %953
        %955 = vrot.lane.b32.xlu0 %v876, 126
        %v956 = vpop.permute.xlu0 %955
        %vm957 = vcmask 1031168
        %v958 = vsel %vm957, %v952, %v954
        %v959 = vsel %vm957, %v954, %v956
        %v961 = vsel %vm472, %v950, 0
        %v964 = vsel %vm476, %v958, 0
        %v967 = vsel %vm476, %v959, 0
        %969 = vmatprep.subr.bf16.mxu0 %v967
        %970 = vmatpush1.bf16.msra.mxu0 %v964
        %971 = vmatprep.subr.bf16.mxu0 0
        %972 = vmatpush1.bf16.msra.mxu0 0
        %973 = vmatprep.subr.bf16.mxu0 0
        %974 = vmatpush1.bf16.msra.mxu0 0
        %975 = vmatprep.subr.bf16.mxu0 0
        %976 = vmatpush1.bf16.msra.mxu0 0
        %977 = vmatprep.subr.bf16.mxu0 0
        %978 = vmatpush1.bf16.msra.mxu0 0
        %979 = vmatprep.subr.bf16.mxu0 0
        %980 = vmatpush1.bf16.msra.mxu0 0
        %981 = vmatprep.subr.bf16.mxu0 0
        %982 = vmatpush1.bf16.msra.mxu0 0
        %983 = vmatprep.subr.bf16.mxu0 0
        %984 = vmatpush1.bf16.msra.mxu0 0
        %985 = vmatprep.subr.bf16.mxu0 0
        %986 = vmatpush1.bf16.msra.mxu0 0
        %987 = vmatprep.subr.bf16.mxu0 0
        %988 = vmatpush1.bf16.msra.mxu0 0
        %989 = vmatprep.subr.bf16.mxu0 0
        %990 = vmatpush1.bf16.msra.mxu0 0
        %991 = vmatprep.subr.bf16.mxu0 0
        %992 = vmatpush1.bf16.msra.mxu0 0
        %993 = vmatprep.subr.bf16.mxu0 0
        %994 = vmatpush1.bf16.msra.mxu0 0
        %995 = vmatprep.subr.bf16.mxu0 0
        %996 = vmatpush1.bf16.msra.mxu0 0
        %997 = vmatprep.subr.bf16.mxu0 0
        %998 = vmatpush1.bf16.msra.mxu0 0
        %999 = vmatprep.subr.bf16.mxu0 0
        %1000 = vmatpush1.bf16.msra.mxu0 0
        %1001 = vmatprep.mubr.bf16.mxu0 0
        %1002 = vmatmul.mubr.bf16.gmra.mrb[0].mxu0 %v961
        %v1003 = vpop.f32.mrb[0].mxu0
        %v1004 = vadd.f32 %v943, %v1003
        %v1005 = vpop.f32.mrb[0].mxu0
        %v1006 = vadd.f32 %v945, %v1005
        %v1007 = vpop.f32.mrb[0].mxu0
        %v1008 = vpop.f32.mrb[0].mxu0
        %1009 = vdwg.mxu0
        %v1010 = vld [vmem:[%s3] sm:$0x3]
        %v1011 = vld [vmem:[#allocation2] sm:$0x3]
        %v1012 = vld [vmem:[#allocation2 + $0x8] sm:$0x3]
        %v1013 = vld [vmem:[#allocation2 + $0x10] sm:$0x3]
        %v1016 = vunpack.c.l.s4 1983009808
        %v1017 = vunpack.c.0.s8 %v1016
        %v1018 = vlaneseq
        %v1019 = vshrl.u32 %v1018, 7
        %v1020 = vsub.s32 %v1017, %v1019
        %v1021 = vrot.slane %v1010, %v1020
        %1022 = vrot.lane.b32.xlu0 %v1021, 96
        %v1023 = vpop.permute.xlu0 %1022
        %1027 = vrot.lane.b32.xlu0 %v1011, 94
        %v1028 = vpop.permute.xlu0 %1027
        %1029 = vrot.lane.b32.xlu0 %v1012, 94
        %v1030 = vpop.permute.xlu0 %1029
        %1031 = vrot.lane.b32.xlu0 %v1013, 94
        %v1032 = vpop.permute.xlu0 %1031
        %vm1033 = vcmask 769024
        %v1034 = vsel %vm1033, %v1028, %v1030
        %v1035 = vsel %vm1033, %v1030, %v1032
        %v1037 = vsel %vm472, %v1023, 0
        %v1040 = vsel %vm476, %v1034, 0
        %v1043 = vsel %vm476, %v1035, 0
        %1045 = vmatprep.subr.bf16.mxu0 %v1043
        %1046 = vmatpush1.bf16.msra.mxu0 %v1040
        %1047 = vmatprep.subr.bf16.mxu0 0
        %1048 = vmatpush1.bf16.msra.mxu0 0
        %1049 = vmatprep.subr.bf16.mxu0 0
        %1050 = vmatpush1.bf16.msra.mxu0 0
        %1051 = vmatprep.subr.bf16.mxu0 0
        %1052 = vmatpush1.bf16.msra.mxu0 0
        %1053 = vmatprep.subr.bf16.mxu0 0
        %1054 = vmatpush1.bf16.msra.mxu0 0
        %1055 = vmatprep.subr.bf16.mxu0 0
        %1056 = vmatpush1.bf16.msra.mxu0 0
        %1057 = vmatprep.subr.bf16.mxu0 0
        %1058 = vmatpush1.bf16.msra.mxu0 0
        %1059 = vmatprep.subr.bf16.mxu0 0
        %1060 = vmatpush1.bf16.msra.mxu0 0
        %1061 = vmatprep.subr.bf16.mxu0 0
        %1062 = vmatpush1.bf16.msra.mxu0 0
        %1063 = vmatprep.subr.bf16.mxu0 0
        %1064 = vmatpush1.bf16.msra.mxu0 0
        %1065 = vmatprep.subr.bf16.mxu0 0
        %1066 = vmatpush1.bf16.msra.mxu0 0
        %1067 = vmatprep.subr.bf16.mxu0 0
        %1068 = vmatpush1.bf16.msra.mxu0 0
        %1069 = vmatprep.subr.bf16.mxu0 0
        %1070 = vmatpush1.bf16.msra.mxu0 0
        %1071 = vmatprep.subr.bf16.mxu0 0
        %1072 = vmatpush1.bf16.msra.mxu0 0
        %1073 = vmatprep.subr.bf16.mxu0 0
        %1074 = vmatpush1.bf16.msra.mxu0 0
        %1075 = vmatprep.subr.bf16.mxu0 0
        %1076 = vmatpush1.bf16.msra.mxu0 0
        %1077 = vmatprep.mubr.bf16.mxu0 0
        %1078 = vmatmul.mubr.bf16.gmra.mrb[0].mxu0 %v1037
        %v1079 = vpop.f32.mrb[0].mxu0
        %v1080 = vadd.f32 0.0, %v1079
        %v1081 = vpop.f32.mrb[0].mxu0
        %v1082 = vadd.f32 0.0, %v1081
        %v1083 = vpop.f32.mrb[0].mxu0
        %v1084 = vpop.f32.mrb[0].mxu0
        %1085 = vdwg.mxu0
        %v1086 = vadd.f32 %v1004, %v1080
        %v1087 = vadd.f32 %v1006, %v1082
        %v1088 = vmul.f32 %v1086, %v396
        %v1089 = vmul.f32 %v1087, %v397
        %v1090 = vadd.f32 %v871, %v1088
        %v1091 = vadd.f32 %v872, %v1089
        %v1094 = vrot.slane %v1090, 4
        %v1095 = vrot.slane %v1091, 4
        %1098 = vst [vmem:[%s352] sm:$0xf0] %v1094
        %1099 = vst [vmem:[%s352 + $0x8] sm:$0xf0] %v1095
        %v1100 = vld [vmem:[%s352] sm:$0xff]
        %v1101 = vld [vmem:[%s352 + $0x8] sm:$0xff]
        %v1102 = vld [vmem:[%s4] sm:$0xff]
        %1104 = vset.pattern.permute.xlu0 0
        %1105 = vperm.xlu0 %1104, %v1102
        %v1106 = vpop.permute.xlu0 %1105
        %v1108 = vmul.f32 %v1100, %v1106
        %v1109 = vmul.f32 %v1101, %v1106
        %v1110 = vld [vmem:[%s5] sm:$0xff]
        %1112 = vset.pattern.permute.xlu0 0
        %1113 = vperm.xlu0 %1112, %v1110
        %v1114 = vpop.permute.xlu0 %1113
        %v1116 = vadd.f32 %v1108, %v1114
        %v1117 = vadd.f32 %v1109, %v1114
        %v1118 = vmax.f32 %v1116, 0.0
        %v1119 = vmax.f32 %v1117, 0.0
        %v1120 = vpack.c.bf16 %v1118, %v1118
        %v1121 = vpack.c.bf16 %v1119, %v1119
        %1124 = vrot.lane.b32.xlu0 %v1120, 17
        %v1125 = vpop.permute.xlu0 %1124
        %1126 = vrot.lane.b32.xlu0 %v1121, 17
        %v1127 = vpop.permute.xlu0 %1126
        %v1128 = vsel %vm436, %v1125, %v1127
        %vm1132 = vcmask 1043592
        %1133 = vst.msk [vmem:[#allocation2] sm:$0xf] %vm1132, %v1125
        %1134 = vst [vmem:[#allocation2 + $0x8] sm:$0xf] %v1128
        %vm1135 = vcmask 134144
        %1136 = vst.msk [vmem:[#allocation2 + $0x10] sm:$0xf] %vm1135, %v1127
        %v1137 = vld [vmem:[%s6] sm:$0x3]
        %v1138 = vld [vmem:[#allocation2] sm:$0xf]
        %v1139 = vld [vmem:[#allocation2 + $0x8] sm:$0xf]
        %v1140 = vld [vmem:[#allocation2 + $0x10] sm:$0xf]
        %v1143 = vunpack.c.l.s4 1983009808
        %v1144 = vunpack.c.0.s8 %v1143
        %v1145 = vlaneseq
        %v1146 = vshrl.u32 %v1145, 7
        %v1147 = vsub.s32 %v1144, %v1146
        %v1148 = vrot.slane %v1137, %v1147
        %1149 = vrot.lane.b32.xlu0 %v1148, 104
        %v1150 = vpop.permute.xlu0 %1149
        %1154 = vrot.lane.b32.xlu0 %v1138, 112
        %v1155 = vpop.permute.xlu0 %1154
        %1156 = vrot.lane.b32.xlu0 %v1139, 112
        %v1157 = vpop.permute.xlu0 %1156
        %1158 = vrot.lane.b32.xlu0 %v1140, 112
        %v1159 = vpop.permute.xlu0 %1158
        %v1160 = vsel %vm469, %v1155, %v1157
        %v1161 = vsel %vm469, %v1157, %v1159
        %vm1162 = vcmask 64512
        %v1164 = vsel %vm1162, %v1150, 0
        %vm1166 = vcmask 1043456
        %v1168 = vsel %vm1166, %v1160, 0
        %v1171 = vsel %vm1166, %v1161, 0
        %1173 = vmatprep.subr.bf16.mxu0 %v1171
        %1174 = vmatpush1.bf16.msra.mxu0 %v1168
        %1175 = vmatprep.subr.bf16.mxu0 0
        %1176 = vmatpush1.bf16.msra.mxu0 0
        %1177 = vmatprep.subr.bf16.mxu0 0
        %1178 = vmatpush1.bf16.msra.mxu0 0
        %1179 = vmatprep.subr.bf16.mxu0 0
        %1180 = vmatpush1.bf16.msra.mxu0 0
        %1181 = vmatprep.subr.bf16.mxu0 0
        %1182 = vmatpush1.bf16.msra.mxu0 0
        %1183 = vmatprep.subr.bf16.mxu0 0
        %1184 = vmatpush1.bf16.msra.mxu0 0
        %1185 = vmatprep.subr.bf16.mxu0 0
        %1186 = vmatpush1.bf16.msra.mxu0 0
        %1187 = vmatprep.subr.bf16.mxu0 0
        %1188 = vmatpush1.bf16.msra.mxu0 0
        %1189 = vmatprep.subr.bf16.mxu0 0
        %1190 = vmatpush1.bf16.msra.mxu0 0
        %1191 = vmatprep.subr.bf16.mxu0 0
        %1192 = vmatpush1.bf16.msra.mxu0 0
        %1193 = vmatprep.subr.bf16.mxu0 0
        %1194 = vmatpush1.bf16.msra.mxu0 0
        %1195 = vmatprep.subr.bf16.mxu0 0
        %1196 = vmatpush1.bf16.msra.mxu0 0
        %1197 = vmatprep.subr.bf16.mxu0 0
        %1198 = vmatpush1.bf16.msra.mxu0 0
        %1199 = vmatprep.subr.bf16.mxu0 0
        %1200 = vmatpush1.bf16.msra.mxu0 0
        %1201 = vmatprep.subr.bf16.mxu0 0
        %1202 = vmatpush1.bf16.msra.mxu0 0
        %1203 = vmatprep.subr.bf16.mxu0 0
        %1204 = vmatpush1.bf16.msra.mxu0 0
        %1205 = vmatprep.mubr.bf16.mxu0 0
        %1206 = vmatmul.mubr.bf16.gmra.mrb[0].mxu0 %v1164
        %v1207 = vpop.f32.mrb[0].mxu0
        %v1208 = vadd.f32 0.0, %v1207
        %v1209 = vpop.f32.mrb[0].mxu0
        %v1210 = vadd.f32 0.0, %v1209
        %v1211 = vpop.f32.mrb[0].mxu0
        %v1212 = vpop.f32.mrb[0].mxu0
        %1213 = vdwg.mxu0
        %v1215 = vsel %vm1162, %v1137, 0
        %v1218 = vsel %vm1166, %v1138, 0
        %v1221 = vsel %vm1166, %v1139, 0
        %1223 = vmatprep.subr.bf16.mxu0 %v1221
        %1224 = vmatpush1.bf16.msra.mxu0 %v1218
        %1225 = vmatprep.subr.bf16.mxu0 0
        %1226 = vmatpush1.bf16.msra.mxu0 0
        %1227 = vmatprep.subr.bf16.mxu0 0
        %1228 = vmatpush1.bf16.msra.mxu0 0
        %1229 = vmatprep.subr.bf16.mxu0 0
        %1230 = vmatpush1.bf16.msra.mxu0 0
        %1231 = vmatprep.subr.bf16.mxu0 0
        %1232 = vmatpush1.bf16.msra.mxu0 0
        %1233 = vmatprep.subr.bf16.mxu0 0
        %1234 = vmatpush1.bf16.msra.mxu0 0
        %1235 = vmatprep.subr.bf16.mxu0 0
        %1236 = vmatpush1.bf16.msra.mxu0 0
        %1237 = vmatprep.subr.bf16.mxu0 0
        %1238 = vmatpush1.bf16.msra.mxu0 0
        %1239 = vmatprep.subr.bf16.mxu0 0
        %1240 = vmatpush1.bf16.msra.mxu0 0
        %1241 = vmatprep.subr.bf16.mxu0 0
        %1242 = vmatpush1.bf16.msra.mxu0 0
        %1243 = vmatprep.subr.bf16.mxu0 0
        %1244 = vmatpush1.bf16.msra.mxu0 0
        %1245 = vmatprep.subr.bf16.mxu0 0
        %1246 = vmatpush1.bf16.msra.mxu0 0
        %1247 = vmatprep.subr.bf16.mxu0 0
        %1248 = vmatpush1.bf16.msra.mxu0 0
        %1249 = vmatprep.subr.bf16.mxu0 0
        %1250 = vmatpush1.bf16.msra.mxu0 0
        %1251 = vmatprep.subr.bf16.mxu0 0
        %1252 = vmatpush1.bf16.msra.mxu0 0
        %1253 = vmatprep.subr.bf16.mxu0 0
        %1254 = vmatpush1.bf16.msra.mxu0 0
        %1255 = vmatprep.mubr.bf16.mxu0 0
        %1256 = vmatmul.mubr.bf16.gmra.mrb[0].mxu0 %v1215
        %v1257 = vpop.f32.mrb[0].mxu0
        %v1258 = vadd.f32 %v1208, %v1257
        %v1259 = vpop.f32.mrb[0].mxu0
        %v1260 = vadd.f32 %v1210, %v1259
        %v1261 = vpop.f32.mrb[0].mxu0
        %v1262 = vpop.f32.mrb[0].mxu0
        %1263 = vdwg.mxu0
        %v1264 = vld [vmem:[%s6] sm:$0x3]
        %v1265 = vld [vmem:[#allocation2] sm:$0xf]
        %v1266 = vld [vmem:[#allocation2 + $0x8] sm:$0xf]
        %v1267 = vld [vmem:[#allocation2 + $0x10] sm:$0xf]
        %v1270 = vunpack.c.l.s4 1983009808
        %v1271 = vunpack.c.0.s8 %v1270
        %v1272 = vlaneseq
        %v1273 = vshrl.u32 %v1272, 7
        %v1274 = vsub.s32 %v1271, %v1273
        %v1275 = vrot.slane %v1264, %v1274
        %1276 = vrot.lane.b32.xlu0 %v1275, 80
        %v1277 = vpop.permute.xlu0 %1276
        %1281 = vrot.lane.b32.xlu0 %v1265, 96
        %v1282 = vpop.permute.xlu0 %1281
        %1283 = vrot.lane.b32.xlu0 %v1266, 96
        %v1284 = vpop.permute.xlu0 %1283
        %1285 = vrot.lane.b32.xlu0 %v1267, 96
        %v1286 = vpop.permute.xlu0 %1285
        %v1287 = vsel %vm597, %v1282, %v1284
        %v1288 = vsel %vm597, %v1284, %v1286
        %v1290 = vsel %vm1162, %v1277, 0
        %v1293 = vsel %vm1166, %v1287, 0
        %v1296 = vsel %vm1166, %v1288, 0
        %1298 = vmatprep.subr.bf16.mxu0 %v1296
        %1299 = vmatpush1.bf16.msra.mxu0 %v1293
        %1300 = vmatprep.subr.bf16.mxu0 0
        %1301 = vmatpush1.bf16.msra.mxu0 0
        %1302 = vmatprep.subr.bf16.mxu0 0
        %1303 = vmatpush1.bf16.msra.mxu0 0
        %1304 = vmatprep.subr.bf16.mxu0 0
        %1305 = vmatpush1.bf16.msra.mxu0 0
        %1306 = vmatprep.subr.bf16.mxu0 0
        %1307 = vmatpush1.bf16.msra.mxu0 0
        %1308 = vmatprep.subr.bf16.mxu0 0
        %1309 = vmatpush1.bf16.msra.mxu0 0
        %1310 = vmatprep.subr.bf16.mxu0 0
        %1311 = vmatpush1.bf16.msra.mxu0 0
        %1312 = vmatprep.subr.bf16.mxu0 0
        %1313 = vmatpush1.bf16.msra.mxu0 0
        %1314 = vmatprep.subr.bf16.mxu0 0
        %1315 = vmatpush1.bf16.msra.mxu0 0
        %1316 = vmatprep.subr.bf16.mxu0 0
        %1317 = vmatpush1.bf16.msra.mxu0 0
        %1318 = vmatprep.subr.bf16.mxu0 0
        %1319 = vmatpush1.bf16.msra.mxu0 0
        %1320 = vmatprep.subr.bf16.mxu0 0
        %1321 = vmatpush1.bf16.msra.mxu0 0
        %1322 = vmatprep.subr.bf16.mxu0 0
        %1323 = vmatpush1.bf16.msra.mxu0 0
        %1324 = vmatprep.subr.bf16.mxu0 0
        %1325 = vmatpush1.bf16.msra.mxu0 0
        %1326 = vmatprep.subr.bf16.mxu0 0
        %1327 = vmatpush1.bf16.msra.mxu0 0
        %1328 = vmatprep.subr.bf16.mxu0 0
        %1329 = vmatpush1.bf16.msra.mxu0 0
        %1330 = vmatprep.mubr.bf16.mxu0 0
        %1331 = vmatmul.mubr.bf16.gmra.mrb[0].mxu0 %v1290
        %v1332 = vpop.f32.mrb[0].mxu0
        %v1333 = vadd.f32 0.0, %v1332
        %v1334 = vpop.f32.mrb[0].mxu0
        %v1335 = vadd.f32 0.0, %v1334
        %v1336 = vpop.f32.mrb[0].mxu0
        %v1337 = vpop.f32.mrb[0].mxu0
        %1338 = vdwg.mxu0
        %v1339 = vadd.f32 %v1258, %v1333
        %v1340 = vadd.f32 %v1260, %v1335
        %v1341 = vmul.f32 %v1339, %v390
        %v1342 = vmul.f32 %v1340, %v391
        %v1343 = vadd.f32 %v1341, 0.0
        %v1344 = vadd.f32 %v1342, 0.0
        %v1345 = vld [vmem:[%s6] sm:$0x3]
        %v1346 = vld [vmem:[#allocation2] sm:$0xf]
        %v1347 = vld [vmem:[#allocation2 + $0x8] sm:$0xf]
        %v1348 = vld [vmem:[#allocation2 + $0x10] sm:$0xf]
        %v1351 = vunpack.c.l.s4 1983009808
        %v1352 = vunpack.c.0.s8 %v1351
        %v1353 = vlaneseq
        %v1354 = vshrl.u32 %v1353, 7
        %v1355 = vsub.s32 %v1352, %v1354
        %v1356 = vrot.slane %v1345, %v1355
        %1357 = vrot.lane.b32.xlu0 %v1356, 96
        %v1358 = vpop.permute.xlu0 %1357
        %1362 = vrot.lane.b32.xlu0 %v1346, 111
        %v1363 = vpop.permute.xlu0 %1362
        %1364 = vrot.lane.b32.xlu0 %v1347, 111
        %v1365 = vpop.permute.xlu0 %1364
        %1366 = vrot.lane.b32.xlu0 %v1348, 111
        %v1367 = vpop.permute.xlu0 %1366
        %v1368 = vsel %vm679, %v1363, %v1365
        %v1369 = vsel %vm679, %v1365, %v1367
        %v1371 = vsel %vm1162, %v1358, 0
        %v1374 = vsel %vm1166, %v1368, 0
        %v1377 = vsel %vm1166, %v1369, 0
        %1379 = vmatprep.subr.bf16.mxu0 %v1377
        %1380 = vmatpush1.bf16.msra.mxu0 %v1374
        %1381 = vmatprep.subr.bf16.mxu0 0
        %1382 = vmatpush1.bf16.msra.mxu0 0
        %1383 = vmatprep.subr.bf16.mxu0 0
        %1384 = vmatpush1.bf16.msra.mxu0 0
        %1385 = vmatprep.subr.bf16.mxu0 0
        %1386 = vmatpush1.bf16.msra.mxu0 0
        %1387 = vmatprep.subr.bf16.mxu0 0
        %1388 = vmatpush1.bf16.msra.mxu0 0
        %1389 = vmatprep.subr.bf16.mxu0 0
        %1390 = vmatpush1.bf16.msra.mxu0 0
        %1391 = vmatprep.subr.bf16.mxu0 0
        %1392 = vmatpush1.bf16.msra.mxu0 0
        %1393 = vmatprep.subr.bf16.mxu0 0
        %1394 = vmatpush1.bf16.msra.mxu0 0
        %1395 = vmatprep.subr.bf16.mxu0 0
        %1396 = vmatpush1.bf16.msra.mxu0 0
        %1397 = vmatprep.subr.bf16.mxu0 0
        %1398 = vmatpush1.bf16.msra.mxu0 0
        %1399 = vmatprep.subr.bf16.mxu0 0
        %1400 = vmatpush1.bf16.msra.mxu0 0
        %1401 = vmatprep.subr.bf16.mxu0 0
        %1402 = vmatpush1.bf16.msra.mxu0 0
        %1403 = vmatprep.subr.bf16.mxu0 0
        %1404 = vmatpush1.bf16.msra.mxu0 0
        %1405 = vmatprep.subr.bf16.mxu0 0
        %1406 = vmatpush1.bf16.msra.mxu0 0
        %1407 = vmatprep.subr.bf16.mxu0 0
        %1408 = vmatpush1.bf16.msra.mxu0 0
        %1409 = vmatprep.subr.bf16.mxu0 0
        %1410 = vmatpush1.bf16.msra.mxu0 0
        %1411 = vmatprep.mubr.bf16.mxu0 0
        %1412 = vmatmul.mubr.bf16.gmra.mrb[0].mxu0 %v1371
        %v1413 = vpop.f32.mrb[0].mxu0
        %v1414 = vadd.f32 0.0, %v1413
        %v1415 = vpop.f32.mrb[0].mxu0
        %v1416 = vadd.f32 0.0, %v1415
        %v1417 = vpop.f32.mrb[0].mxu0
        %v1418 = vpop.f32.mrb[0].mxu0
        %1419 = vdwg.mxu0
        %1420 = vrot.lane.b32.xlu0 %v1356, 120
        %v1421 = vpop.permute.xlu0 %1420
        %1422 = vrot.lane.b32.xlu0 %v1346, 127
        %v1423 = vpop.permute.xlu0 %1422
        %1424 = vrot.lane.b32.xlu0 %v1347, 127
        %v1425 = vpop.permute.xlu0 %1424
        %1426 = vrot.lane.b32.xlu0 %v1348, 127
        %v1427 = vpop.permute.xlu0 %1426
        %v1428 = vsel %vm740, %v1423, %v1425
        %v1429 = vsel %vm740, %v1425, %v1427
        %v1431 = vsel %vm1162, %v1421, 0
        %v1434 = vsel %vm1166, %v1428, 0
        %v1437 = vsel %vm1166, %v1429, 0
        %1439 = vmatprep.subr.bf16.mxu0 %v1437
        %1440 = vmatpush1.bf16.msra.mxu0 %v1434
        %1441 = vmatprep.subr.bf16.mxu0 0
        %1442 = vmatpush1.bf16.msra.mxu0 0
        %1443 = vmatprep.subr.bf16.mxu0 0
        %1444 = vmatpush1.bf16.msra.mxu0 0
        %1445 = vmatprep.subr.bf16.mxu0 0
        %1446 = vmatpush1.bf16.msra.mxu0 0
        %1447 = vmatprep.subr.bf16.mxu0 0
        %1448 = vmatpush1.bf16.msra.mxu0 0
        %1449 = vmatprep.subr.bf16.mxu0 0
        %1450 = vmatpush1.bf16.msra.mxu0 0
        %1451 = vmatprep.subr.bf16.mxu0 0
        %1452 = vmatpush1.bf16.msra.mxu0 0
        %1453 = vmatprep.subr.bf16.mxu0 0
        %1454 = vmatpush1.bf16.msra.mxu0 0
        %1455 = vmatprep.subr.bf16.mxu0 0
        %1456 = vmatpush1.bf16.msra.mxu0 0
        %1457 = vmatprep.subr.bf16.mxu0 0
        %1458 = vmatpush1.bf16.msra.mxu0 0
        %1459 = vmatprep.subr.bf16.mxu0 0
        %1460 = vmatpush1.bf16.msra.mxu0 0
        %1461 = vmatprep.subr.bf16.mxu0 0
        %1462 = vmatpush1.bf16.msra.mxu0 0
        %1463 = vmatprep.subr.bf16.mxu0 0
        %1464 = vmatpush1.bf16.msra.mxu0 0
        %1465 = vmatprep.subr.bf16.mxu0 0
        %1466 = vmatpush1.bf16.msra.mxu0 0
        %1467 = vmatprep.subr.bf16.mxu0 0
        %1468 = vmatpush1.bf16.msra.mxu0 0
        %1469 = vmatprep.subr.bf16.mxu0 0
        %1470 = vmatpush1.bf16.msra.mxu0 0
        %1471 = vmatprep.mubr.bf16.mxu0 0
        %1472 = vmatmul.mubr.bf16.gmra.mrb[0].mxu0 %v1431
        %v1473 = vpop.f32.mrb[0].mxu0
        %v1474 = vadd.f32 %v1414, %v1473
        %v1475 = vpop.f32.mrb[0].mxu0
        %v1476 = vadd.f32 %v1416, %v1475
        %v1477 = vpop.f32.mrb[0].mxu0
        %v1478 = vpop.f32.mrb[0].mxu0
        %1479 = vdwg.mxu0
        %v1480 = vld [vmem:[%s6] sm:$0x3]
        %v1481 = vld [vmem:[#allocation2] sm:$0xf]
        %v1482 = vld [vmem:[#allocation2 + $0x8] sm:$0xf]
        %v1483 = vld [vmem:[#allocation2 + $0x10] sm:$0xf]
        %v1486 = vunpack.c.l.s4 1983009808
        %v1487 = vunpack.c.0.s8 %v1486
        %v1488 = vlaneseq
        %v1489 = vshrl.u32 %v1488, 7
        %v1490 = vsub.s32 %v1487, %v1489
        %v1491 = vrot.slane %v1480, %v1490
        %1492 = vrot.lane.b32.xlu0 %v1491, 72
        %v1493 = vpop.permute.xlu0 %1492
        %1497 = vrot.lane.b32.xlu0 %v1481, 95
        %v1498 = vpop.permute.xlu0 %1497
        %1499 = vrot.lane.b32.xlu0 %v1482, 95
        %v1500 = vpop.permute.xlu0 %1499
        %1501 = vrot.lane.b32.xlu0 %v1483, 95
        %v1502 = vpop.permute.xlu0 %1501
        %v1503 = vsel %vm816, %v1498, %v1500
        %v1504 = vsel %vm816, %v1500, %v1502
        %v1506 = vsel %vm1162, %v1493, 0
        %v1509 = vsel %vm1166, %v1503, 0
        %v1512 = vsel %vm1166, %v1504, 0
        %1514 = vmatprep.subr.bf16.mxu0 %v1512
        %1515 = vmatpush1.bf16.msra.mxu0 %v1509
        %1516 = vmatprep.subr.bf16.mxu0 0
        %1517 = vmatpush1.bf16.msra.mxu0 0
        %1518 = vmatprep.subr.bf16.mxu0 0
        %1519 = vmatpush1.bf16.msra.mxu0 0
        %1520 = vmatprep.subr.bf16.mxu0 0
        %1521 = vmatpush1.bf16.msra.mxu0 0
        %1522 = vmatprep.subr.bf16.mxu0 0
        %1523 = vmatpush1.bf16.msra.mxu0 0
        %1524 = vmatprep.subr.bf16.mxu0 0
        %1525 = vmatpush1.bf16.msra.mxu0 0
        %1526 = vmatprep.subr.bf16.mxu0 0
        %1527 = vmatpush1.bf16.msra.mxu0 0
        %1528 = vmatprep.subr.bf16.mxu0 0
        %1529 = vmatpush1.bf16.msra.mxu0 0
        %1530 = vmatprep.subr.bf16.mxu0 0
        %1531 = vmatpush1.bf16.msra.mxu0 0
        %1532 = vmatprep.subr.bf16.mxu0 0
        %1533 = vmatpush1.bf16.msra.mxu0 0
        %1534 = vmatprep.subr.bf16.mxu0 0
        %1535 = vmatpush1.bf16.msra.mxu0 0
        %1536 = vmatprep.subr.bf16.mxu0 0
        %1537 = vmatpush1.bf16.msra.mxu0 0
        %1538 = vmatprep.subr.bf16.mxu0 0
        %1539 = vmatpush1.bf16.msra.mxu0 0
        %1540 = vmatprep.subr.bf16.mxu0 0
        %1541 = vmatpush1.bf16.msra.mxu0 0
        %1542 = vmatprep.subr.bf16.mxu0 0
        %1543 = vmatpush1.bf16.msra.mxu0 0
        %1544 = vmatprep.subr.bf16.mxu0 0
        %1545 = vmatpush1.bf16.msra.mxu0 0
        %1546 = vmatprep.mubr.bf16.mxu0 0
        %1547 = vmatmul.mubr.bf16.gmra.mrb[0].mxu0 %v1506
        %v1548 = vpop.f32.mrb[0].mxu0
        %v1549 = vadd.f32 0.0, %v1548
        %v1550 = vpop.f32.mrb[0].mxu0
        %v1551 = vadd.f32 0.0, %v1550
        %v1552 = vpop.f32.mrb[0].mxu0
        %v1553 = vpop.f32.mrb[0].mxu0
        %1554 = vdwg.mxu0
        %v1555 = vadd.f32 %v1474, %v1549
        %v1556 = vadd.f32 %v1476, %v1551
        %v1557 = vadd.f32 %v1343, %v1555
        %v1558 = vadd.f32 %v1344, %v1556
        %v1559 = vld [vmem:[%s6] sm:$0x3]
        %v1560 = vld [vmem:[#allocation2] sm:$0xf]
        %v1561 = vld [vmem:[#allocation2 + $0x8] sm:$0xf]
        %v1562 = vld [vmem:[#allocation2 + $0x10] sm:$0xf]
        %v1565 = vunpack.c.l.s4 1983009808
        %v1566 = vunpack.c.0.s8 %v1565
        %v1567 = vlaneseq
        %v1568 = vshrl.u32 %v1567, 7
        %v1569 = vsub.s32 %v1566, %v1568
        %v1570 = vrot.slane %v1559, %v1569
        %1571 = vrot.lane.b32.xlu0 %v1570, 88
        %v1572 = vpop.permute.xlu0 %1571
        %1576 = vrot.lane.b32.xlu0 %v1560, 110
        %v1577 = vpop.permute.xlu0 %1576
        %1578 = vrot.lane.b32.xlu0 %v1561, 110
        %v1579 = vpop.permute.xlu0 %1578
        %1580 = vrot.lane.b32.xlu0 %v1562, 110
        %v1581 = vpop.permute.xlu0 %1580
        %v1582 = vsel %vm896, %v1577, %v1579
        %v1583 = vsel %vm896, %v1579, %v1581
        %v1585 = vsel %vm1162, %v1572, 0
        %v1588 = vsel %vm1166, %v1582, 0
        %v1591 = vsel %vm1166, %v1583, 0
        %1593 = vmatprep.subr.bf16.mxu0 %v1591
        %1594 = vmatpush1.bf16.msra.mxu0 %v1588
        %1595 = vmatprep.subr.bf16.mxu0 0
        %1596 = vmatpush1.bf16.msra.mxu0 0
        %1597 = vmatprep.subr.bf16.mxu0 0
        %1598 = vmatpush1.bf16.msra.mxu0 0
        %1599 = vmatprep.subr.bf16.mxu0 0
        %1600 = vmatpush1.bf16.msra.mxu0 0
        %1601 = vmatprep.subr.bf16.mxu0 0
        %1602 = vmatpush1.bf16.msra.mxu0 0
        %1603 = vmatprep.subr.bf16.mxu0 0
        %1604 = vmatpush1.bf16.msra.mxu0 0
        %1605 = vmatprep.subr.bf16.mxu0 0
        %1606 = vmatpush1.bf16.msra.mxu0 0
        %1607 = vmatprep.subr.bf16.mxu0 0
        %1608 = vmatpush1.bf16.msra.mxu0 0
        %1609 = vmatprep.subr.bf16.mxu0 0
        %1610 = vmatpush1.bf16.msra.mxu0 0
        %1611 = vmatprep.subr.bf16.mxu0 0
        %1612 = vmatpush1.bf16.msra.mxu0 0
        %1613 = vmatprep.subr.bf16.mxu0 0
        %1614 = vmatpush1.bf16.msra.mxu0 0
        %1615 = vmatprep.subr.bf16.mxu0 0
        %1616 = vmatpush1.bf16.msra.mxu0 0
        %1617 = vmatprep.subr.bf16.mxu0 0
        %1618 = vmatpush1.bf16.msra.mxu0 0
        %1619 = vmatprep.subr.bf16.mxu0 0
        %1620 = vmatpush1.bf16.msra.mxu0 0
        %1621 = vmatprep.subr.bf16.mxu0 0
        %1622 = vmatpush1.bf16.msra.mxu0 0
        %1623 = vmatprep.subr.bf16.mxu0 0
        %1624 = vmatpush1.bf16.msra.mxu0 0
        %1625 = vmatprep.mubr.bf16.mxu0 0
        %1626 = vmatmul.mubr.bf16.gmra.mrb[0].mxu0 %v1585
        %v1627 = vpop.f32.mrb[0].mxu0
        %v1628 = vadd.f32 0.0, %v1627
        %v1629 = vpop.f32.mrb[0].mxu0
        %v1630 = vadd.f32 0.0, %v1629
        %v1631 = vpop.f32.mrb[0].mxu0
        %v1632 = vpop.f32.mrb[0].mxu0
        %1633 = vdwg.mxu0
        %1634 = vrot.lane.b32.xlu0 %v1570, 112
        %v1635 = vpop.permute.xlu0 %1634
        %1636 = vrot.lane.b32.xlu0 %v1560, 126
        %v1637 = vpop.permute.xlu0 %1636
        %1638 = vrot.lane.b32.xlu0 %v1561, 126
        %v1639 = vpop.permute.xlu0 %1638
        %1640 = vrot.lane.b32.xlu0 %v1562, 126
        %v1641 = vpop.permute.xlu0 %1640
        %v1642 = vsel %vm957, %v1637, %v1639
        %v1643 = vsel %vm957, %v1639, %v1641
        %v1645 = vsel %vm1162, %v1635, 0
        %v1648 = vsel %vm1166, %v1642, 0
        %v1651 = vsel %vm1166, %v1643, 0
        %1653 = vmatprep.subr.bf16.mxu0 %v1651
        %1654 = vmatpush1.bf16.msra.mxu0 %v1648
        %1655 = vmatprep.subr.bf16.mxu0 0
        %1656 = vmatpush1.bf16.msra.mxu0 0
        %1657 = vmatprep.subr.bf16.mxu0 0
        %1658 = vmatpush1.bf16.msra.mxu0 0
        %1659 = vmatprep.subr.bf16.mxu0 0
        %1660 = vmatpush1.bf16.msra.mxu0 0
        %1661 = vmatprep.subr.bf16.mxu0 0
        %1662 = vmatpush1.bf16.msra.mxu0 0
        %1663 = vmatprep.subr.bf16.mxu0 0
        %1664 = vmatpush1.bf16.msra.mxu0 0
        %1665 = vmatprep.subr.bf16.mxu0 0
        %1666 = vmatpush1.bf16.msra.mxu0 0
        %1667 = vmatprep.subr.bf16.mxu0 0
        %1668 = vmatpush1.bf16.msra.mxu0 0
        %1669 = vmatprep.subr.bf16.mxu0 0
        %1670 = vmatpush1.bf16.msra.mxu0 0
        %1671 = vmatprep.subr.bf16.mxu0 0
        %1672 = vmatpush1.bf16.msra.mxu0 0
        %1673 = vmatprep.subr.bf16.mxu0 0
        %1674 = vmatpush1.bf16.msra.mxu0 0
        %1675 = vmatprep.subr.bf16.mxu0 0
        %1676 = vmatpush1.bf16.msra.mxu0 0
        %1677 = vmatprep.subr.bf16.mxu0 0
        %1678 = vmatpush1.bf16.msra.mxu0 0
        %1679 = vmatprep.subr.bf16.mxu0 0
        %1680 = vmatpush1.bf16.msra.mxu0 0
        %1681 = vmatprep.subr.bf16.mxu0 0
        %1682 = vmatpush1.bf16.msra.mxu0 0
        %1683 = vmatprep.subr.bf16.mxu0 0
        %1684 = vmatpush1.bf16.msra.mxu0 0
        %1685 = vmatprep.mubr.bf16.mxu0 0
        %1686 = vmatmul.mubr.bf16.gmra.mrb[0].mxu0 %v1645
        %v1687 = vpop.f32.mrb[0].mxu0
        %v1688 = vadd.f32 %v1628, %v1687
        %v1689 = vpop.f32.mrb[0].mxu0
        %v1690 = vadd.f32 %v1630, %v1689
        %v1691 = vpop.f32.mrb[0].mxu0
        %v1692 = vpop.f32.mrb[0].mxu0
        %1693 = vdwg.mxu0
        %v1694 = vld [vmem:[%s6] sm:$0x3]
        %v1695 = vld [vmem:[#allocation2] sm:$0xf]
        %v1696 = vld [vmem:[#allocation2 + $0x8] sm:$0xf]
        %v1697 = vld [vmem:[#allocation2 + $0x10] sm:$0xf]
        %v1700 = vunpack.c.l.s4 1983009808
        %v1701 = vunpack.c.0.s8 %v1700
        %v1702 = vlaneseq
        %v1703 = vshrl.u32 %v1702, 7
        %v1704 = vsub.s32 %v1701, %v1703
        %v1705 = vrot.slane %v1694, %v1704
        %1706 = vrot.lane.b32.xlu0 %v1705, 64
        %v1707 = vpop.permute.xlu0 %1706
        %1711 = vrot.lane.b32.xlu0 %v1695, 94
        %v1712 = vpop.permute.xlu0 %1711
        %1713 = vrot.lane.b32.xlu0 %v1696, 94
        %v1714 = vpop.permute.xlu0 %1713
        %1715 = vrot.lane.b32.xlu0 %v1697, 94
        %v1716 = vpop.permute.xlu0 %1715
        %v1717 = vsel %vm1033, %v1712, %v1714
        %v1718 = vsel %vm1033, %v1714, %v1716
        %v1720 = vsel %vm1162, %v1707, 0
        %v1723 = vsel %vm1166, %v1717, 0
        %v1726 = vsel %vm1166, %v1718, 0
        %1728 = vmatprep.subr.bf16.mxu0 %v1726
        %1729 = vmatpush1.bf16.msra.mxu0 %v1723
        %1730 = vmatprep.subr.bf16.mxu0 0
        %1731 = vmatpush1.bf16.msra.mxu0 0
        %1732 = vmatprep.subr.bf16.mxu0 0
        %1733 = vmatpush1.bf16.msra.mxu0 0
        %1734 = vmatprep.subr.bf16.mxu0 0
        %1735 = vmatpush1.bf16.msra.mxu0 0
        %1736 = vmatprep.subr.bf16.mxu0 0
        %1737 = vmatpush1.bf16.msra.mxu0 0
        %1738 = vmatprep.subr.bf16.mxu0 0
        %1739 = vmatpush1.bf16.msra.mxu0 0
        %1740 = vmatprep.subr.bf16.mxu0 0
        %1741 = vmatpush1.bf16.msra.mxu0 0
        %1742 = vmatprep.subr.bf16.mxu0 0
        %1743 = vmatpush1.bf16.msra.mxu0 0
        %1744 = vmatprep.subr.bf16.mxu0 0
        %1745 = vmatpush1.bf16.msra.mxu0 0
        %1746 = vmatprep.subr.bf16.mxu0 0
        %1747 = vmatpush1.bf16.msra.mxu0 0
        %1748 = vmatprep.subr.bf16.mxu0 0
        %1749 = vmatpush1.bf16.msra.mxu0 0
        %1750 = vmatprep.subr.bf16.mxu0 0
        %1751 = vmatpush1.bf16.msra.mxu0 0
        %1752 = vmatprep.subr.bf16.mxu0 0
        %1753 = vmatpush1.bf16.msra.mxu0 0
        %1754 = vmatprep.subr.bf16.mxu0 0
        %1755 = vmatpush1.bf16.msra.mxu0 0
        %1756 = vmatprep.subr.bf16.mxu0 0
        %1757 = vmatpush1.bf16.msra.mxu0 0
        %1758 = vmatprep.subr.bf16.mxu0 0
        %1759 = vmatpush1.bf16.msra.mxu0 0
        %1760 = vmatprep.mubr.bf16.mxu0 0
        %1761 = vmatmul.mubr.bf16.gmra.mrb[0].mxu0 %v1720
        %v1762 = vpop.f32.mrb[0].mxu0
        %v1763 = vadd.f32 0.0, %v1762
        %v1764 = vpop.f32.mrb[0].mxu0
        %v1765 = vadd.f32 0.0, %v1764
        %v1766 = vpop.f32.mrb[0].mxu0
        %v1767 = vpop.f32.mrb[0].mxu0
        %1768 = vdwg.mxu0
        %v1769 = vadd.f32 %v1688, %v1763
        %v1770 = vadd.f32 %v1690, %v1765
        %v1771 = vmul.f32 %v1769, %v396
        %v1772 = vmul.f32 %v1770, %v397
        %v1773 = vadd.f32 %v1557, %v1771
        %v1774 = vadd.f32 %v1558, %v1772
        %1775 = vst [vmem:[%s352 + $0x10] sm:$0xf] %v1773
        %1776 = vst [vmem:[%s352 + $0x18] sm:$0xf] %v1774
        %v1777 = vld [vmem:[%s352] sm:$0xff]
        %v1778 = vld [vmem:[%s352 + $0x8] sm:$0xff]
        %v1779 = vld [vmem:[%s352 + $0x10] sm:$0xf]
        %v1780 = vld [vmem:[%s352 + $0x18] sm:$0xf]
        %v1781 = vld [vmem:[%s7] sm:$0xff]
        %v1782 = vld [vmem:[%s7 + $0x8] sm:$0xf]
        %1784 = vset.pattern.permute.xlu0 0
        %1785 = vperm.xlu0 %1784, %v1781
        %v1786 = vpop.permute.xlu0 %1785
        %1789 = vset.pattern.permute.xlu0 0
        %1790 = vperm.xlu0 %1789, %v1782
        %v1791 = vpop.permute.xlu0 %1790
        %v1793 = vmul.f32 %v1777, %v1786
        %v1794 = vmul.f32 %v1778, %v1786
        %v1795 = vmul.f32 %v1779, %v1791
        %v1796 = vmul.f32 %v1780, %v1791
        %v1797 = vld [vmem:[%s8] sm:$0xff]
        %v1798 = vld [vmem:[%s8 + $0x8] sm:$0xf]
        %1800 = vset.pattern.permute.xlu0 0
        %1801 = vperm.xlu0 %1800, %v1797
        %v1802 = vpop.permute.xlu0 %1801
        %1805 = vset.pattern.permute.xlu0 0
        %1806 = vperm.xlu0 %1805, %v1798
        %v1807 = vpop.permute.xlu0 %1806
        %v1809 = vadd.f32 %v1793, %v1802
        %v1810 = vadd.f32 %v1794, %v1802
        %v1811 = vadd.f32 %v1795, %v1807
        %v1812 = vadd.f32 %v1796, %v1807
        %v1813 = vmax.f32 %v1809, 0.0
        %v1814 = vmax.f32 %v1810, 0.0
        %v1815 = vmax.f32 %v1811, 0.0
        %v1816 = vmax.f32 %v1812, 0.0
        %v1817 = vpack.c.bf16 %v1815, %v1813
        %v1818 = vpack.c.bf16 %v1816, %v1814
        %1821 = vrot.lane.b32.xlu0 %v1817, 17
        %v1822 = vpop.permute.xlu0 %1821
        %1823 = vrot.lane.b32.xlu0 %v1818, 17
        %v1824 = vpop.permute.xlu0 %1823
        %v1825 = vsel %vm436, %v1822, %v1824
        %vm1829 = vcmask 1045640
        %1830 = vst.msk [vmem:[#allocation2] sm:$0x3f] %vm1829, %v1822
        %1831 = vst [vmem:[#allocation2 + $0x8] sm:$0x3f] %v1825
        %vm1832 = vcmask 136192
        %1833 = vst.msk [vmem:[#allocation2 + $0x10] sm:$0x3f] %vm1832, %v1824
        %v1834 = vld [vmem:[%s9] sm:$0x3]
        %v1835 = vld [vmem:[#allocation2] sm:$0x3f]
        %v1836 = vld [vmem:[#allocation2 + $0x8] sm:$0x3f]
        %v1837 = vld [vmem:[#allocation2 + $0x10] sm:$0x3f]
        %v1840 = vunpack.c.l.s4 1983009808
        %v1841 = vunpack.c.0.s8 %v1840
        %v1842 = vlaneseq
        %v1843 = vshrl.u32 %v1842, 7
        %v1844 = vsub.s32 %v1841, %v1843
        %v1845 = vrot.slane %v1834, %v1844
        %1846 = vrot.lane.b32.xlu0 %v1845, 92
        %v1847 = vpop.permute.xlu0 %1846
        %1851 = vrot.lane.b32.xlu0 %v1835, 112
        %v1852 = vpop.permute.xlu0 %1851
        %1853 = vrot.lane.b32.xlu0 %v1836, 112
        %v1854 = vpop.permute.xlu0 %1853
        %1855 = vrot.lane.b32.xlu0 %v1837, 112
        %v1856 = vpop.permute.xlu0 %1855
        %v1857 = vsel %vm469, %v1852, %v1854
        %v1858 = vsel %vm469, %v1854, %v1856
        %vm1859 = vcmask 97280
        %v1861 = vsel %vm1859, %v1847, 0
        %vm1863 = vcmask 1045504
        %v1865 = vsel %vm1863, %v1857, 0
        %v1868 = vsel %vm1863, %v1858, 0
        %1870 = vmatprep.subr.bf16.mxu0 %v1868
        %1871 = vmatpush1.bf16.msra.mxu0 %v1865
        %1872 = vmatprep.subr.bf16.mxu0 0
        %1873 = vmatpush1.bf16.msra.mxu0 0
        %1874 = vmatprep.subr.bf16.mxu0 0
        %1875 = vmatpush1.bf16.msra.mxu0 0
        %1876 = vmatprep.subr.bf16.mxu0 0
        %1877 = vmatpush1.bf16.msra.mxu0 0
        %1878 = vmatprep.subr.bf16.mxu0 0
        %1879 = vmatpush1.bf16.msra.mxu0 0
        %1880 = vmatprep.subr.bf16.mxu0 0
        %1881 = vmatpush1.bf16.msra.mxu0 0
        %1882 = vmatprep.subr.bf16.mxu0 0
        %1883 = vmatpush1.bf16.msra.mxu0 0
        %1884 = vmatprep.subr.bf16.mxu0 0
        %1885 = vmatpush1.bf16.msra.mxu0 0
        %1886 = vmatprep.subr.bf16.mxu0 0
        %1887 = vmatpush1.bf16.msra.mxu0 0
        %1888 = vmatprep.subr.bf16.mxu0 0
        %1889 = vmatpush1.bf16.msra.mxu0 0
        %1890 = vmatprep.subr.bf16.mxu0 0
        %1891 = vmatpush1.bf16.msra.mxu0 0
        %1892 = vmatprep.subr.bf16.mxu0 0
        %1893 = vmatpush1.bf16.msra.mxu0 0
        %1894 = vmatprep.subr.bf16.mxu0 0
        %1895 = vmatpush1.bf16.msra.mxu0 0
        %1896 = vmatprep.subr.bf16.mxu0 0
        %1897 = vmatpush1.bf16.msra.mxu0 0
        %1898 = vmatprep.subr.bf16.mxu0 0
        %1899 = vmatpush1.bf16.msra.mxu0 0
        %1900 = vmatprep.subr.bf16.mxu0 0
        %1901 = vmatpush1.bf16.msra.mxu0 0
        %1902 = vmatprep.mubr.bf16.mxu0 0
        %1903 = vmatmul.mubr.bf16.gmra.mrb[0].mxu0 %v1861
        %v1904 = vpop.f32.mrb[0].mxu0
        %v1905 = vadd.f32 0.0, %v1904
        %v1906 = vpop.f32.mrb[0].mxu0
        %v1907 = vadd.f32 0.0, %v1906
        %v1908 = vpop.f32.mrb[0].mxu0
        %v1909 = vpop.f32.mrb[0].mxu0
        %1910 = vdwg.mxu0
        %v1912 = vsel %vm1859, %v1834, 0
        %v1915 = vsel %vm1863, %v1835, 0
        %v1918 = vsel %vm1863, %v1836, 0
        %1920 = vmatprep.subr.bf16.mxu0 %v1918
        %1921 = vmatpush1.bf16.msra.mxu0 %v1915
        %1922 = vmatprep.subr.bf16.mxu0 0
        %1923 = vmatpush1.bf16.msra.mxu0 0
        %1924 = vmatprep.subr.bf16.mxu0 0
        %1925 = vmatpush1.bf16.msra.mxu0 0
        %1926 = vmatprep.subr.bf16.mxu0 0
        %1927 = vmatpush1.bf16.msra.mxu0 0
        %1928 = vmatprep.subr.bf16.mxu0 0
        %1929 = vmatpush1.bf16.msra.mxu0 0
        %1930 = vmatprep.subr.bf16.mxu0 0
        %1931 = vmatpush1.bf16.msra.mxu0 0
        %1932 = vmatprep.subr.bf16.mxu0 0
        %1933 = vmatpush1.bf16.msra.mxu0 0
        %1934 = vmatprep.subr.bf16.mxu0 0
        %1935 = vmatpush1.bf16.msra.mxu0 0
        %1936 = vmatprep.subr.bf16.mxu0 0
        %1937 = vmatpush1.bf16.msra.mxu0 0
        %1938 = vmatprep.subr.bf16.mxu0 0
        %1939 = vmatpush1.bf16.msra.mxu0 0
        %1940 = vmatprep.subr.bf16.mxu0 0
        %1941 = vmatpush1.bf16.msra.mxu0 0
        %1942 = vmatprep.subr.bf16.mxu0 0
        %1943 = vmatpush1.bf16.msra.mxu0 0
        %1944 = vmatprep.subr.bf16.mxu0 0
        %1945 = vmatpush1.bf16.msra.mxu0 0
        %1946 = vmatprep.subr.bf16.mxu0 0
        %1947 = vmatpush1.bf16.msra.mxu0 0
        %1948 = vmatprep.subr.bf16.mxu0 0
        %1949 = vmatpush1.bf16.msra.mxu0 0
        %1950 = vmatprep.subr.bf16.mxu0 0
        %1951 = vmatpush1.bf16.msra.mxu0 0
        %1952 = vmatprep.mubr.bf16.mxu0 0
        %1953 = vmatmul.mubr.bf16.gmra.mrb[0].mxu0 %v1912
        %v1954 = vpop.f32.mrb[0].mxu0
        %v1955 = vadd.f32 %v1905, %v1954
        %v1956 = vpop.f32.mrb[0].mxu0
        %v1957 = vadd.f32 %v1907, %v1956
        %v1958 = vpop.f32.mrb[0].mxu0
        %v1959 = vpop.f32.mrb[0].mxu0
        %1960 = vdwg.mxu0
        %v1961 = vld [vmem:[%s9] sm:$0x3]
        %v1962 = vld [vmem:[#allocation2] sm:$0x3f]
        %v1963 = vld [vmem:[#allocation2 + $0x8] sm:$0x3f]
        %v1964 = vld [vmem:[#allocation2 + $0x10] sm:$0x3f]
        %v1967 = vunpack.c.l.s4 1983009808
        %v1968 = vunpack.c.0.s8 %v1967
        %v1969 = vlaneseq
        %v1970 = vshrl.u32 %v1969, 7
        %v1971 = vsub.s32 %v1968, %v1970
        %v1972 = vrot.slane %v1961, %v1971
        %1973 = vrot.lane.b32.xlu0 %v1972, 56
        %v1974 = vpop.permute.xlu0 %1973
        %1978 = vrot.lane.b32.xlu0 %v1962, 96
        %v1979 = vpop.permute.xlu0 %1978
        %1980 = vrot.lane.b32.xlu0 %v1963, 96
        %v1981 = vpop.permute.xlu0 %1980
        %1982 = vrot.lane.b32.xlu0 %v1964, 96
        %v1983 = vpop.permute.xlu0 %1982
        %v1984 = vsel %vm597, %v1979, %v1981
        %v1985 = vsel %vm597, %v1981, %v1983
        %v1987 = vsel %vm1859, %v1974, 0
        %v1990 = vsel %vm1863, %v1984, 0
        %v1993 = vsel %vm1863, %v1985, 0
        %1995 = vmatprep.subr.bf16.mxu0 %v1993
        %1996 = vmatpush1.bf16.msra.mxu0 %v1990
        %1997 = vmatprep.subr.bf16.mxu0 0
        %1998 = vmatpush1.bf16.msra.mxu0 0
        %1999 = vmatprep.subr.bf16.mxu0 0
        %2000 = vmatpush1.bf16.msra.mxu0 0
        %2001 = vmatprep.subr.bf16.mxu0 0
        %2002 = vmatpush1.bf16.msra.mxu0 0
        %2003 = vmatprep.subr.bf16.mxu0 0
        %2004 = vmatpush1.bf16.msra.mxu0 0
        %2005 = vmatprep.subr.bf16.mxu0 0
        %2006 = vmatpush1.bf16.msra.mxu0 0
        %2007 = vmatprep.subr.bf16.mxu0 0
        %2008 = vmatpush1.bf16.msra.mxu0 0
        %2009 = vmatprep.subr.bf16.mxu0 0
        %2010 = vmatpush1.bf16.msra.mxu0 0
        %2011 = vmatprep.subr.bf16.mxu0 0
        %2012 = vmatpush1.bf16.msra.mxu0 0
        %2013 = vmatprep.subr.bf16.mxu0 0
        %2014 = vmatpush1.bf16.msra.mxu0 0
        %2015 = vmatprep.subr.bf16.mxu0 0
        %2016 = vmatpush1.bf16.msra.mxu0 0
        %2017 = vmatprep.subr.bf16.mxu0 0
        %2018 = vmatpush1.bf16.msra.mxu0 0
        %2019 = vmatprep.subr.bf16.mxu0 0
        %2020 = vmatpush1.bf16.msra.mxu0 0
        %2021 = vmatprep.subr.bf16.mxu0 0
        %2022 = vmatpush1.bf16.msra.mxu0 0
        %2023 = vmatprep.subr.bf16.mxu0 0
        %2024 = vmatpush1.bf16.msra.mxu0 0
        %2025 = vmatprep.subr.bf16.mxu0 0
        %2026 = vmatpush1.bf16.msra.mxu0 0
        %2027 = vmatprep.mubr.bf16.mxu0 0
        %2028 = vmatmul.mubr.bf16.gmra.mrb[0].mxu0 %v1987
        %v2029 = vpop.f32.mrb[0].mxu0
        %v2030 = vadd.f32 0.0, %v2029
        %v2031 = vpop.f32.mrb[0].mxu0
        %v2032 = vadd.f32 0.0, %v2031
        %v2033 = vpop.f32.mrb[0].mxu0
        %v2034 = vpop.f32.mrb[0].mxu0
        %2035 = vdwg.mxu0
        %v2036 = vadd.f32 %v1955, %v2030
        %v2037 = vadd.f32 %v1957, %v2032
        %v2038 = vmul.f32 %v2036, %v390
        %v2039 = vmul.f32 %v2037, %v391
        %v2040 = vadd.f32 %v2038, 0.0
        %v2041 = vadd.f32 %v2039, 0.0
        %v2042 = vld [vmem:[%s9] sm:$0x3]
        %v2043 = vld [vmem:[#allocation2] sm:$0x3f]
        %v2044 = vld [vmem:[#allocation2 + $0x8] sm:$0x3f]
        %v2045 = vld [vmem:[#allocation2 + $0x10] sm:$0x3f]
        %v2048 = vunpack.c.l.s4 1983009808
        %v2049 = vunpack.c.0.s8 %v2048
        %v2050 = vlaneseq
        %v2051 = vshrl.u32 %v2050, 7
        %v2052 = vsub.s32 %v2049, %v2051
        %v2053 = vrot.slane %v2042, %v2052
        %2054 = vrot.lane.b32.xlu0 %v2053, 80
        %v2055 = vpop.permute.xlu0 %2054
        %2059 = vrot.lane.b32.xlu0 %v2043, 111
        %v2060 = vpop.permute.xlu0 %2059
        %2061 = vrot.lane.b32.xlu0 %v2044, 111
        %v2062 = vpop.permute.xlu0 %2061
        %2063 = vrot.lane.b32.xlu0 %v2045, 111
        %v2064 = vpop.permute.xlu0 %2063
        %v2065 = vsel %vm679, %v2060, %v2062
        %v2066 = vsel %vm679, %v2062, %v2064
        %v2068 = vsel %vm1859, %v2055, 0
        %v2071 = vsel %vm1863, %v2065, 0
        %v2074 = vsel %vm1863, %v2066, 0
        %2076 = vmatprep.subr.bf16.mxu0 %v2074
        %2077 = vmatpush1.bf16.msra.mxu0 %v2071
        %2078 = vmatprep.subr.bf16.mxu0 0
        %2079 = vmatpush1.bf16.msra.mxu0 0
        %2080 = vmatprep.subr.bf16.mxu0 0
        %2081 = vmatpush1.bf16.msra.mxu0 0
        %2082 = vmatprep.subr.bf16.mxu0 0
        %2083 = vmatpush1.bf16.msra.mxu0 0
        %2084 = vmatprep.subr.bf16.mxu0 0
        %2085 = vmatpush1.bf16.msra.mxu0 0
        %2086 = vmatprep.subr.bf16.mxu0 0
        %2087 = vmatpush1.bf16.msra.mxu0 0
        %2088 = vmatprep.subr.bf16.mxu0 0
        %2089 = vmatpush1.bf16.msra.mxu0 0
        %2090 = vmatprep.subr.bf16.mxu0 0
        %2091 = vmatpush1.bf16.msra.mxu0 0
        %2092 = vmatprep.subr.bf16.mxu0 0
        %2093 = vmatpush1.bf16.msra.mxu0 0
        %2094 = vmatprep.subr.bf16.mxu0 0
        %2095 = vmatpush1.bf16.msra.mxu0 0
        %2096 = vmatprep.subr.bf16.mxu0 0
        %2097 = vmatpush1.bf16.msra.mxu0 0
        %2098 = vmatprep.subr.bf16.mxu0 0
        %2099 = vmatpush1.bf16.msra.mxu0 0
        %2100 = vmatprep.subr.bf16.mxu0 0
        %2101 = vmatpush1.bf16.msra.mxu0 0
        %2102 = vmatprep.subr.bf16.mxu0 0
        %2103 = vmatpush1.bf16.msra.mxu0 0
        %2104 = vmatprep.subr.bf16.mxu0 0
        %2105 = vmatpush1.bf16.msra.mxu0 0
        %2106 = vmatprep.subr.bf16.mxu0 0
        %2107 = vmatpush1.bf16.msra.mxu0 0
        %2108 = vmatprep.mubr.bf16.mxu0 0
        %2109 = vmatmul.mubr.bf16.gmra.mrb[0].mxu0 %v2068
        %v2110 = vpop.f32.mrb[0].mxu0
        %v2111 = vadd.f32 0.0, %v2110
        %v2112 = vpop.f32.mrb[0].mxu0
        %v2113 = vadd.f32 0.0, %v2112
        %v2114 = vpop.f32.mrb[0].mxu0
        %v2115 = vpop.f32.mrb[0].mxu0
        %2116 = vdwg.mxu0
        %2117 = vrot.lane.b32.xlu0 %v2053, 116
        %v2118 = vpop.permute.xlu0 %2117
        %2119 = vrot.lane.b32.xlu0 %v2043, 127
        %v2120 = vpop.permute.xlu0 %2119
        %2121 = vrot.lane.b32.xlu0 %v2044, 127
        %v2122 = vpop.permute.xlu0 %2121
        %2123 = vrot.lane.b32.xlu0 %v2045, 127
        %v2124 = vpop.permute.xlu0 %2123
        %v2125 = vsel %vm740, %v2120, %v2122
        %v2126 = vsel %vm740, %v2122, %v2124
        %v2128 = vsel %vm1859, %v2118, 0
        %v2131 = vsel %vm1863, %v2125, 0
        %v2134 = vsel %vm1863, %v2126, 0
        %2136 = vmatprep.subr.bf16.mxu0 %v2134
        %2137 = vmatpush1.bf16.msra.mxu0 %v2131
        %2138 = vmatprep.subr.bf16.mxu0 0
        %2139 = vmatpush1.bf16.msra.mxu0 0
        %2140 = vmatprep.subr.bf16.mxu0 0
        %2141 = vmatpush1.bf16.msra.mxu0 0
        %2142 = vmatprep.subr.bf16.mxu0 0
        %2143 = vmatpush1.bf16.msra.mxu0 0
        %2144 = vmatprep.subr.bf16.mxu0 0
        %2145 = vmatpush1.bf16.msra.mxu0 0
        %2146 = vmatprep.subr.bf16.mxu0 0
        %2147 = vmatpush1.bf16.msra.mxu0 0
        %2148 = vmatprep.subr.bf16.mxu0 0
        %2149 = vmatpush1.bf16.msra.mxu0 0
        %2150 = vmatprep.subr.bf16.mxu0 0
        %2151 = vmatpush1.bf16.msra.mxu0 0
        %2152 = vmatprep.subr.bf16.mxu0 0
        %2153 = vmatpush1.bf16.msra.mxu0 0
        %2154 = vmatprep.subr.bf16.mxu0 0
        %2155 = vmatpush1.bf16.msra.mxu0 0
        %2156 = vmatprep.subr.bf16.mxu0 0
        %2157 = vmatpush1.bf16.msra.mxu0 0
        %2158 = vmatprep.subr.bf16.mxu0 0
        %2159 = vmatpush1.bf16.msra.mxu0 0
        %2160 = vmatprep.subr.bf16.mxu0 0
        %2161 = vmatpush1.bf16.msra.mxu0 0
        %2162 = vmatprep.subr.bf16.mxu0 0
        %2163 = vmatpush1.bf16.msra.mxu0 0
        %2164 = vmatprep.subr.bf16.mxu0 0
        %2165 = vmatpush1.bf16.msra.mxu0 0
        %2166 = vmatprep.subr.bf16.mxu0 0
        %2167 = vmatpush1.bf16.msra.mxu0 0
        %2168 = vmatprep.mubr.bf16.mxu0 0
        %2169 = vmatmul.mubr.bf16.gmra.mrb[0].mxu0 %v2128
        %v2170 = vpop.f32.mrb[0].mxu0
        %v2171 = vadd.f32 %v2111, %v2170
        %v2172 = vpop.f32.mrb[0].mxu0
        %v2173 = vadd.f32 %v2113, %v2172
        %v2174 = vpop.f32.mrb[0].mxu0
        %v2175 = vpop.f32.mrb[0].mxu0
        %2176 = vdwg.mxu0
        %v2177 = vld [vmem:[%s9] sm:$0x3]
        %v2178 = vld [vmem:[#allocation2] sm:$0x3f]
        %v2179 = vld [vmem:[#allocation2 + $0x8] sm:$0x3f]
        %v2180 = vld [vmem:[#allocation2 + $0x10] sm:$0x3f]
        %v2183 = vunpack.c.l.s4 1983009808
        %v2184 = vunpack.c.0.s8 %v2183
        %v2185 = vlaneseq
        %v2186 = vshrl.u32 %v2185, 7
        %v2187 = vsub.s32 %v2184, %v2186
        %v2188 = vrot.slane %v2177, %v2187
        %2189 = vrot.lane.b32.xlu0 %v2188, 44
        %v2190 = vpop.permute.xlu0 %2189
        %2194 = vrot.lane.b32.xlu0 %v2178, 95
        %v2195 = vpop.permute.xlu0 %2194
        %2196 = vrot.lane.b32.xlu0 %v2179, 95
        %v2197 = vpop.permute.xlu0 %2196
        %2198 = vrot.lane.b32.xlu0 %v2180, 95
        %v2199 = vpop.permute.xlu0 %2198
        %v2200 = vsel %vm816, %v2195, %v2197
        %v2201 = vsel %vm816, %v2197, %v2199
        %v2203 = vsel %vm1859, %v2190, 0
        %v2206 = vsel %vm1863, %v2200, 0
        %v2209 = vsel %vm1863, %v2201, 0
        %2211 = vmatprep.subr.bf16.mxu0 %v2209
        %2212 = vmatpush1.bf16.msra.mxu0 %v2206
        %2213 = vmatprep.subr.bf16.mxu0 0
        %2214 = vmatpush1.bf16.msra.mxu0 0
        %2215 = vmatprep.subr.bf16.mxu0 0
        %2216 = vmatpush1.bf16.msra.mxu0 0
        %2217 = vmatprep.subr.bf16.mxu0 0
        %2218 = vmatpush1.bf16.msra.mxu0 0
        %2219 = vmatprep.subr.bf16.mxu0 0
        %2220 = vmatpush1.bf16.msra.mxu0 0
        %2221 = vmatprep.subr.bf16.mxu0 0
        %2222 = vmatpush1.bf16.msra.mxu0 0
        %2223 = vmatprep.subr.bf16.mxu0 0
        %2224 = vmatpush1.bf16.msra.mxu0 0
        %2225 = vmatprep.subr.bf16.mxu0 0
        %2226 = vmatpush1.bf16.msra.mxu0 0
        %2227 = vmatprep.subr.bf16.mxu0 0
        %2228 = vmatpush1.bf16.msra.mxu0 0
        %2229 = vmatprep.subr.bf16.mxu0 0
        %2230 = vmatpush1.bf16.msra.mxu0 0
        %2231 = vmatprep.subr.bf16.mxu0 0
        %2232 = vmatpush1.bf16.msra.mxu0 0
        %2233 = vmatprep.subr.bf16.mxu0 0
        %2234 = vmatpush1.bf16.msra.mxu0 0
        %2235 = vmatprep.subr.bf16.mxu0 0
        %2236 = vmatpush1.bf16.msra.mxu0 0
        %2237 = vmatprep.subr.bf16.mxu0 0
        %2238 = vmatpush1.bf16.msra.mxu0 0
        %2239 = vmatprep.subr.bf16.mxu0 0
        %2240 = vmatpush1.bf16.msra.mxu0 0
        %2241 = vmatprep.subr.bf16.mxu0 0
        %2242 = vmatpush1.bf16.msra.mxu0 0
        %2243 = vmatprep.mubr.bf16.mxu0 0
        %2244 = vmatmul.mubr.bf16.gmra.mrb[0].mxu0 %v2203
        %v2245 = vpop.f32.mrb[0].mxu0
        %v2246 = vadd.f32 0.0, %v2245
        %v2247 = vpop.f32.mrb[0].mxu0
        %v2248 = vadd.f32 0.0, %v2247
        %v2249 = vpop.f32.mrb[0].mxu0
        %v2250 = vpop.f32.mrb[0].mxu0
        %2251 = vdwg.mxu0
        %v2252 = vadd.f32 %v2171, %v2246
        %v2253 = vadd.f32 %v2173, %v2248
        %v2254 = vadd.f32 %v2040, %v2252
        %v2255 = vadd.f32 %v2041, %v2253
        %v2256 = vld [vmem:[%s9] sm:$0x3]
        %v2257 = vld [vmem:[#allocation2] sm:$0x3f]
        %v2258 = vld [vmem:[#allocation2 + $0x8] sm:$0x3f]
        %v2259 = vld [vmem:[#allocation2 + $0x10] sm:$0x3f]
        %v2262 = vunpack.c.l.s4 1983009808
        %v2263 = vunpack.c.0.s8 %v2262
        %v2264 = vlaneseq
        %v2265 = vshrl.u32 %v2264, 7
        %v2266 = vsub.s32 %v2263, %v2265
        %v2267 = vrot.slane %v2256, %v2266
        %2268 = vrot.lane.b32.xlu0 %v2267, 68
        %v2269 = vpop.permute.xlu0 %2268
        %2273 = vrot.lane.b32.xlu0 %v2257, 110
        %v2274 = vpop.permute.xlu0 %2273
        %2275 = vrot.lane.b32.xlu0 %v2258, 110
        %v2276 = vpop.permute.xlu0 %2275
        %2277 = vrot.lane.b32.xlu0 %v2259, 110
        %v2278 = vpop.permute.xlu0 %2277
        %v2279 = vsel %vm896, %v2274, %v2276
        %v2280 = vsel %vm896, %v2276, %v2278
        %v2282 = vsel %vm1859, %v2269, 0
        %v2285 = vsel %vm1863, %v2279, 0
        %v2288 = vsel %vm1863, %v2280, 0
        %2290 = vmatprep.subr.bf16.mxu0 %v2288
        %2291 = vmatpush1.bf16.msra.mxu0 %v2285
        %2292 = vmatprep.subr.bf16.mxu0 0
        %2293 = vmatpush1.bf16.msra.mxu0 0
        %2294 = vmatprep.subr.bf16.mxu0 0
        %2295 = vmatpush1.bf16.msra.mxu0 0
        %2296 = vmatprep.subr.bf16.mxu0 0
        %2297 = vmatpush1.bf16.msra.mxu0 0
        %2298 = vmatprep.subr.bf16.mxu0 0
        %2299 = vmatpush1.bf16.msra.mxu0 0
        %2300 = vmatprep.subr.bf16.mxu0 0
        %2301 = vmatpush1.bf16.msra.mxu0 0
        %2302 = vmatprep.subr.bf16.mxu0 0
        %2303 = vmatpush1.bf16.msra.mxu0 0
        %2304 = vmatprep.subr.bf16.mxu0 0
        %2305 = vmatpush1.bf16.msra.mxu0 0
        %2306 = vmatprep.subr.bf16.mxu0 0
        %2307 = vmatpush1.bf16.msra.mxu0 0
        %2308 = vmatprep.subr.bf16.mxu0 0
        %2309 = vmatpush1.bf16.msra.mxu0 0
        %2310 = vmatprep.subr.bf16.mxu0 0
        %2311 = vmatpush1.bf16.msra.mxu0 0
        %2312 = vmatprep.subr.bf16.mxu0 0
        %2313 = vmatpush1.bf16.msra.mxu0 0
        %2314 = vmatprep.subr.bf16.mxu0 0
        %2315 = vmatpush1.bf16.msra.mxu0 0
        %2316 = vmatprep.subr.bf16.mxu0 0
        %2317 = vmatpush1.bf16.msra.mxu0 0
        %2318 = vmatprep.subr.bf16.mxu0 0
        %2319 = vmatpush1.bf16.msra.mxu0 0
        %2320 = vmatprep.subr.bf16.mxu0 0
        %2321 = vmatpush1.bf16.msra.mxu0 0
        %2322 = vmatprep.mubr.bf16.mxu0 0
        %2323 = vmatmul.mubr.bf16.gmra.mrb[0].mxu0 %v2282
        %v2324 = vpop.f32.mrb[0].mxu0
        %v2325 = vadd.f32 0.0, %v2324
        %v2326 = vpop.f32.mrb[0].mxu0
        %v2327 = vadd.f32 0.0, %v2326
        %v2328 = vpop.f32.mrb[0].mxu0
        %v2329 = vpop.f32.mrb[0].mxu0
        %2330 = vdwg.mxu0
        %2331 = vrot.lane.b32.xlu0 %v2267, 104
        %v2332 = vpop.permute.xlu0 %2331
        %2333 = vrot.lane.b32.xlu0 %v2257, 126
        %v2334 = vpop.permute.xlu0 %2333
        %2335 = vrot.lane.b32.xlu0 %v2258, 126
        %v2336 = vpop.permute.xlu0 %2335
        %2337 = vrot.lane.b32.xlu0 %v2259, 126
        %v2338 = vpop.permute.xlu0 %2337
        %v2339 = vsel %vm957, %v2334, %v2336
        %v2340 = vsel %vm957, %v2336, %v2338
        %v2342 = vsel %vm1859, %v2332, 0
        %v2345 = vsel %vm1863, %v2339, 0
        %v2348 = vsel %vm1863, %v2340, 0
        %2350 = vmatprep.subr.bf16.mxu0 %v2348
        %2351 = vmatpush1.bf16.msra.mxu0 %v2345
        %2352 = vmatprep.subr.bf16.mxu0 0
        %2353 = vmatpush1.bf16.msra.mxu0 0
        %2354 = vmatprep.subr.bf16.mxu0 0
        %2355 = vmatpush1.bf16.msra.mxu0 0
        %2356 = vmatprep.subr.bf16.mxu0 0
        %2357 = vmatpush1.bf16.msra.mxu0 0
        %2358 = vmatprep.subr.bf16.mxu0 0
        %2359 = vmatpush1.bf16.msra.mxu0 0
        %2360 = vmatprep.subr.bf16.mxu0 0
        %2361 = vmatpush1.bf16.msra.mxu0 0
        %2362 = vmatprep.subr.bf16.mxu0 0
        %2363 = vmatpush1.bf16.msra.mxu0 0
        %2364 = vmatprep.subr.bf16.mxu0 0
        %2365 = vmatpush1.bf16.msra.mxu0 0
        %2366 = vmatprep.subr.bf16.mxu0 0
        %2367 = vmatpush1.bf16.msra.mxu0 0
        %2368 = vmatprep.subr.bf16.mxu0 0
        %2369 = vmatpush1.bf16.msra.mxu0 0
        %2370 = vmatprep.subr.bf16.mxu0 0
        %2371 = vmatpush1.bf16.msra.mxu0 0
        %2372 = vmatprep.subr.bf16.mxu0 0
        %2373 = vmatpush1.bf16.msra.mxu0 0
        %2374 = vmatprep.subr.bf16.mxu0 0
        %2375 = vmatpush1.bf16.msra.mxu0 0
        %2376 = vmatprep.subr.bf16.mxu0 0
        %2377 = vmatpush1.bf16.msra.mxu0 0
        %2378 = vmatprep.subr.bf16.mxu0 0
        %2379 = vmatpush1.bf16.msra.mxu0 0
        %2380 = vmatprep.subr.bf16.mxu0 0
        %2381 = vmatpush1.bf16.msra.mxu0 0
        %2382 = vmatprep.mubr.bf16.mxu0 0
        %2383 = vmatmul.mubr.bf16.gmra.mrb[0].mxu0 %v2342
        %v2384 = vpop.f32.mrb[0].mxu0
        %v2385 = vadd.f32 %v2325, %v2384
        %v2386 = vpop.f32.mrb[0].mxu0
        %v2387 = vadd.f32 %v2327, %v2386
        %v2388 = vpop.f32.mrb[0].mxu0
        %v2389 = vpop.f32.mrb[0].mxu0
        %2390 = vdwg.mxu0
        %v2391 = vld [vmem:[%s9] sm:$0x3]
        %v2392 = vld [vmem:[#allocation2] sm:$0x3f]
        %v2393 = vld [vmem:[#allocation2 + $0x8] sm:$0x3f]
        %v2394 = vld [vmem:[#allocation2 + $0x10] sm:$0x3f]
        %v2397 = vunpack.c.l.s4 1983009808
        %v2398 = vunpack.c.0.s8 %v2397
        %v2399 = vlaneseq
        %v2400 = vshrl.u32 %v2399, 7
        %v2401 = vsub.s32 %v2398, %v2400
        %v2402 = vrot.slane %v2391, %v2401
        %2403 = vrot.lane.b32.xlu0 %v2402, 32
        %v2404 = vpop.permute.xlu0 %2403
        %2408 = vrot.lane.b32.xlu0 %v2392, 94
        %v2409 = vpop.permute.xlu0 %2408
        %2410 = vrot.lane.b32.xlu0 %v2393, 94
        %v2411 = vpop.permute.xlu0 %2410
        %2412 = vrot.lane.b32.xlu0 %v2394, 94
        %v2413 = vpop.permute.xlu0 %2412
        %v2414 = vsel %vm1033, %v2409, %v2411
        %v2415 = vsel %vm1033, %v2411, %v2413
        %v2417 = vsel %vm1859, %v2404, 0
        %v2420 = vsel %vm1863, %v2414, 0
        %v2423 = vsel %vm1863, %v2415, 0
        %2425 = vmatprep.subr.bf16.mxu0 %v2423
        %2426 = vmatpush1.bf16.msra.mxu0 %v2420
        %2427 = vmatprep.subr.bf16.mxu0 0
        %2428 = vmatpush1.bf16.msra.mxu0 0
        %2429 = vmatprep.subr.bf16.mxu0 0
        %2430 = vmatpush1.bf16.msra.mxu0 0
        %2431 = vmatprep.subr.bf16.mxu0 0
        %2432 = vmatpush1.bf16.msra.mxu0 0
        %2433 = vmatprep.subr.bf16.mxu0 0
        %2434 = vmatpush1.bf16.msra.mxu0 0
        %2435 = vmatprep.subr.bf16.mxu0 0
        %2436 = vmatpush1.bf16.msra.mxu0 0
        %2437 = vmatprep.subr.bf16.mxu0 0
        %2438 = vmatpush1.bf16.msra.mxu0 0
        %2439 = vmatprep.subr.bf16.mxu0 0
        %2440 = vmatpush1.bf16.msra.mxu0 0
        %2441 = vmatprep.subr.bf16.mxu0 0
        %2442 = vmatpush1.bf16.msra.mxu0 0
        %2443 = vmatprep.subr.bf16.mxu0 0
        %2444 = vmatpush1.bf16.msra.mxu0 0
        %2445 = vmatprep.subr.bf16.mxu0 0
        %2446 = vmatpush1.bf16.msra.mxu0 0
        %2447 = vmatprep.subr.bf16.mxu0 0
        %2448 = vmatpush1.bf16.msra.mxu0 0
        %2449 = vmatprep.subr.bf16.mxu0 0
        %2450 = vmatpush1.bf16.msra.mxu0 0
        %2451 = vmatprep.subr.bf16.mxu0 0
        %2452 = vmatpush1.bf16.msra.mxu0 0
        %2453 = vmatprep.subr.bf16.mxu0 0
        %2454 = vmatpush1.bf16.msra.mxu0 0
        %2455 = vmatprep.subr.bf16.mxu0 0
        %2456 = vmatpush1.bf16.msra.mxu0 0
        %2457 = vmatprep.mubr.bf16.mxu0 0
        %2458 = vmatmul.mubr.bf16.gmra.mrb[0].mxu0 %v2417
        %v2459 = vpop.f32.mrb[0].mxu0
        %v2460 = vadd.f32 0.0, %v2459
        %v2461 = vpop.f32.mrb[0].mxu0
        %v2462 = vadd.f32 0.0, %v2461
        %v2463 = vpop.f32.mrb[0].mxu0
        %v2464 = vpop.f32.mrb[0].mxu0
        %2465 = vdwg.mxu0
        %v2466 = vadd.f32 %v2385, %v2460
        %v2467 = vadd.f32 %v2387, %v2462
        %v2468 = vmul.f32 %v2466, %v396
        %v2469 = vmul.f32 %v2467, %v397
        %v2470 = vadd.f32 %v2254, %v2468
        %v2471 = vadd.f32 %v2255, %v2469
        %v2474 = vrot.slane %v2470, 4
        %v2475 = vrot.slane %v2471, 4
        %2478 = vst [vmem:[%s352 + $0x10] sm:$0xf0] %v2474
        %2479 = vst [vmem:[%s352 + $0x18] sm:$0xf0] %v2475
        %s2480 = sand.u32 %s247, 1
        %s2481 = scalar_lea.sflag [#allocation4], %s2480
        %s2482 = sand.u32 %s247, 1
        %s2483 = smul.addr %s2482, 32
        %s2484 = scalar_lea.vmem [#allocation3], %s2483
        // Predicated region
        $region61: #{tpu_custom_call.1} parent=59 // pred_check
          %p2485 = pneg %p257
        $region62: #{tpu_custom_call.1} parent=59 // pred_check_branch
          %2487 = sbr.rel (%p2485) target = $region64
        $region63: #{tpu_custom_call.1} parent=59 // pred_region
          %s2489 = ssub.s32 512, 512
          %2490 = vsyncadd %s2481, %s2489
          %s2491 = smul.addr %s24, 4
          %s2492 = smul.addr %s2491, 128
          %s2493 = scalar_lea.hbm %s10, %s2492
          %s2494 = sshll.u32 %s2484, 4
          %s2495 = int_to_ptr.vmem [resolvable:$true] %s2494
          %2500 = dma.vmem_to_hbm [thread:$0]  %s2495, 512, %s2493, %s2481, 256, 256, 16
        $region64: #{tpu_custom_call.1} parent=59 // pred_fallthru
          _
      $region60: #{tpu_custom_call.1} parent=5 // pred_fallthru
        _
      %p2501 = scmp.le.s32.totalorder 2, %s19
      // Predicated region
      $region65: #{tpu_custom_call.1} parent=5 // pred_check
        %p2502 = pneg %p2501
      $region66: #{tpu_custom_call.1} parent=5 // pred_check_branch
        %2504 = sbr.rel (%p2502) target = $region68
      $region67: #{tpu_custom_call.1} parent=5 // pred_region
        %s2505 = ssub.s32 %s19, 2
        // Predicated region
        $region69: #{tpu_custom_call.1} parent=67 // pred_check
          %p2506 = pneg %p263
        $region70: #{tpu_custom_call.1} parent=67 // pred_check_branch
          %2508 = sbr.rel (%p2506) target = $region72
        $region71: #{tpu_custom_call.1} parent=67 // pred_region
          %s2509 = sand.u32 %s248, 1
          %s2510 = scalar_lea.sflag [#allocation4], %s2509
          %s2511 = sand.u32 %s248, 1
          %s2512 = smul.addr %s2511, 32
          %s2513 = scalar_lea.vmem [#allocation3], %s2512
          %2514 = dma.done %s2510, 512
        $region72: #{tpu_custom_call.1} parent=67 // pred_fallthru
          _
      $region68: #{tpu_custom_call.1} parent=5 // pred_fallthru
        _
    $region6: #{tpu_custom_call.1} parent=1 // loop_footer
      %s23 = sadd.s32 1, %s19
    $region7: #{tpu_custom_call.1} parent=1 // loop_footer_branch
      %18 = sbr.rel target = $region3
    $region8: #{tpu_custom_call.1} parent=1 // loop_exit
      _
    %2515 = vsyncpa [#allocation4], 1
    %s2516 = scalar_lea.sflag [#allocation4], 1
    %2517 = vsyncpa %s2516, 1

</llo_original>
